<compile_context>
chip_gen: v7x
topology: tpu7x:2x2x1
jax: 0.10.0
libtpu: 0.0.40
codegen_flags: <defaults>
</compile_context>

<pallas_src>
import jax
import jax.numpy as jnp
from jax.experimental import pallas as pl
from jax.experimental.pallas import tpu as pltpu


# ----------------------------- Pallas kernel --------------------------------
def _regressor_kernel(x_ref, w1_ref, b1_ref, w3_ref, w2_ref, b2_ref, o_ref):
    """One batch tile: y = W2 @ lrelu(W3' @ lrelu(W1 @ x + b1')) + b2.

    Batch on lanes, features on sublanes.  b3 is already folded into W3'
    through a ones-channel carried by the padded b1'.
    """
    x = x_ref[...]                                     # [in, T]  (batch on lanes)
    hp = jax.lax.Precision.HIGHEST

    # fc1 (+ bias). input_size == 1 -> outer product on the VPU (broadcast
    # multiply-add); an MXU matmul with K == 1 would save almost nothing.
    if x.shape[0] == 1:
        h = w1_ref[...] * x + b1_ref[...]              # [d_pad, T]
    else:
        h = jnp.dot(w1_ref[...], x, precision=hp,
                    preferred_element_type=jnp.float32) + b1_ref[...]
    # LeakyReLU(0.1): single max instead of compare+select.
    h = jnp.maximum(h, 0.1 * h)

    # fc3 on the MXU; b3 is folded into w3 (ones channel), no explicit add.
    h = jnp.dot(w3_ref[...], h, precision=hp,
                preferred_element_type=jnp.float32)
    h = jnp.maximum(h, 0.1 * h)

    # fc2 on the MXU (M = out_size, K = d_pad) instead of VPU mul + XLU
    # sublane reduce -- the MXU slot has huge slack, the VALU slot does not.
    o_ref[...] = jnp.dot(w2_ref[...], h, precision=hp,
                         preferred_element_type=jnp.float32) + b2_ref[...]


# ------------------------------ glue / wrapper -------------------------------
def _round_up(x, m):
    return (x + m - 1) // m * m


def prepare_params(params):
    """One-time layout/padding of the PyTorch-style parameters.

    Pads the hidden dim to a sublane multiple with >= 1 spare channel; that
    spare channel is set to 1.0 (via b1 padding, leaky_relu(1) == 1) and the
    matching column of the padded W3 carries b3, folding the bias into the
    fc3 matmul.  Zero padding elsewhere is exact (leaky_relu(0) == 0).
    """
    d = params["w3"].shape[0]
    out_size = params["w2"].shape[0]
    d_pad = _round_up(d + 1, 8)                 # >= d+1: spare channel for b3 fold

    w1 = jnp.pad(params["w1"], ((0, d_pad - d), (0, 0)))          # [d_pad, in]
    b1 = jnp.pad(params["b1"], (0, d_pad - d)).at[d].set(1.0)     # ones channel
    b1 = b1.reshape(d_pad, 1)                                     # [d_pad, 1]
    w3 = jnp.pad(params["w3"], ((0, d_pad - d), (0, d_pad - d)))  # [d_pad, d_pad]
    w3 = w3.at[:d, d].set(params["b3"])                           # fold b3
    w2 = jnp.pad(params["w2"], ((0, 0), (0, d_pad - d)))          # [out, d_pad]
    b2 = params["b2"].reshape(out_size, 1)                        # [out, 1]
    return {"w1": w1, "b1": b1, "w3": w3, "w2": w2, "b2": b2}


def regressor_forward(x, prep, *, max_tile_n=16384):
    """x: [N, input_size] float32 -> [N, output_size] float32."""
    n, in_size = x.shape
    d_pad = prep["w3"].shape[0]
    out_size = prep["w2"].shape[0]

    # Batch on the lane axis.  For input_size == 1 this is a free reshape
    # (contiguity preserved), not a transpose/pad HBM pass.
    x_t = x.reshape(1, n) if in_size == 1 else x.T

    # Large lane tiles amortize per-step overhead and give >= 64 KB DMAs, but
    # keep at least 2 grid steps so multi-TC chips (v7x) can shard the batch
    # axis.  Live intermediates are ~136 B/lane -> a few MB at 16K lanes,
    # far under every generation's VMEM limit.
    tile_n = min(max_tile_n, max(128, _round_up(pl.cdiv(n, 2), 128)))
    grid = (pl.cdiv(n, tile_n),)   # ragged last block: extra lanes computed, never written

    def resident(shape):           # tiny weights: same block every step -> stay in VMEM
        return pl.BlockSpec(shape, lambda i: (0, 0))

    out_t = pl.pallas_call(
        _regressor_kernel,
        out_shape=jax.ShapeDtypeStruct((out_size, n), jnp.float32),
        grid=grid,
        in_specs=[
            pl.BlockSpec((in_size, tile_n), lambda i: (0, i)),   # x tile (lane-dense)
            resident((d_pad, in_size)),                          # W1
            resident((d_pad, 1)),                                # b1 (+ ones channel)
            resident((d_pad, d_pad)),                            # W3 (b3 folded in)
            resident((out_size, d_pad)),                         # W2
            resident((out_size, 1)),                             # b2
        ],
        out_specs=pl.BlockSpec((out_size, tile_n), lambda i: (0, i)),  # lane-dense out
        compiler_params=pltpu.CompilerParams(
            dimension_semantics=("parallel",),   # batch tiles are independent
        ),
    )(x_t, prep["w1"], prep["b1"], prep["w3"], prep["w2"], prep["b2"])

    return out_t.reshape(n, 1) if out_size == 1 else out_t.T


def init_params(key, d=10, input_size=1, output_size=1):
    """Mirrors regressor.__initialize_weights: Linear weight ~ N(0,1), bias = 0."""
    k1, k2, k3 = jax.random.split(key, 3)
    return {
        "w1": jax.random.normal(k1, (d, input_size), jnp.float32),
        "b1": jnp.zeros((d,), jnp.float32),
        "w3": jax.random.normal(k2, (d, d), jnp.float32),
        "b3": jnp.zeros((d,), jnp.float32),
        "w2": jax.random.normal(k3, (output_size, d), jnp.float32),
        "b2": jnp.zeros((output_size,), jnp.float32),
    }


# ------------------------------ reference check ------------------------------
def regressor_reference(x, params):
    hp = jax.lax.Precision.HIGHEST
    h = jnp.dot(x, params["w1"].T, precision=hp) + params["b1"]
    h = jnp.where(h >= 0, h, 0.1 * h)
    h = jnp.dot(h, params["w3"].T, precision=hp) + params["b3"]
    h = jnp.where(h >= 0, h, 0.1 * h)
    return jnp.dot(h, params["w2"].T, precision=hp) + params["b2"]


if __name__ == "__main__":
    key = jax.random.PRNGKey(0)
    k_param, k_b1, k_b3, k_b2, k_x = jax.random.split(key, 5)

    d = 10           # hidden width (module default)
    input_size = 1   # module default
    output_size = 1  # module default
    n = 1000         # not a tile multiple: exercises the ragged last block + 2-step grid

    params = init_params(k_param, d=d, input_size=input_size,
                         output_size=output_size)
    # Non-zero biases so the folded-b3 / bias paths are actually exercised.
    params["b1"] = 0.1 * jax.random.normal(k_b1, (d,), jnp.float32)
    params["b3"] = 0.1 * jax.random.normal(k_b3, (d,), jnp.float32)
    params["b2"] = 0.1 * jax.random.normal(k_b2, (output_size,), jnp.float32)

    x = jax.random.normal(k_x, (n, input_size), jnp.float32)

    prep = prepare_params(params)                # one-time weight layout/padding
    fwd = jax.jit(regressor_forward)
    out = jax.block_until_ready(fwd(x, prep))

    ref = regressor_reference(x, params)
    assert out.shape == (n, output_size), out.shape
    assert jnp.allclose(out, ref, atol=1e-4, rtol=1e-4), float(
        jnp.max(jnp.abs(out - ref)))

    print("KERNEL_OK")
</pallas_src>

<mosaic_0001>
module attributes {stable_mosaic.version = 11 : i64} {
  func.func @_regressor_kernel(%arg0: i32, %arg1: memref<1x512xf32, #tpu.memory_space<vmem>>, %arg2: memref<16x1xf32, #tpu.memory_space<vmem>>, %arg3: memref<16x1xf32, #tpu.memory_space<vmem>>, %arg4: memref<16x16xf32, #tpu.memory_space<vmem>>, %arg5: memref<1x16xf32, #tpu.memory_space<vmem>>, %arg6: memref<1x1xf32, #tpu.memory_space<vmem>>, %arg7: memref<1x512xf32, #tpu.memory_space<vmem>>) attributes {dimension_semantics = [#tpu.dimension_semantics<parallel>], iteration_bounds = array<i64: 2>, scalar_prefetch = 0 : i64, scratch_operands = 0 : i64, tpu.core_type = #tpu.core_type<tc>, window_params = [{transform_indices = @transform_0, window_bounds = array<i64: 1, 512>}, {pipeline_mode = #tpu.pipeline_mode<synchronous>, transform_indices = @transform_1, window_bounds = array<i64: 16, 1>}, {pipeline_mode = #tpu.pipeline_mode<synchronous>, transform_indices = @transform_2, window_bounds = array<i64: 16, 1>}, {pipeline_mode = #tpu.pipeline_mode<synchronous>, transform_indices = @transform_3, window_bounds = array<i64: 16, 16>}, {pipeline_mode = #tpu.pipeline_mode<synchronous>, transform_indices = @transform_4, window_bounds = array<i64: 1, 16>}, {pipeline_mode = #tpu.pipeline_mode<synchronous>, transform_indices = @transform_5, window_bounds = array<i64: 1, 1>}, {transform_indices = @transform_6, window_bounds = array<i64: 1, 512>}]} {
    %c0 = arith.constant 0 : index
    %c0_0 = arith.constant 0 : index
    %0 = vector.load %arg1[%c0, %c0_0] : memref<1x512xf32, #tpu.memory_space<vmem>>, vector<1x512xf32>
    %c0_1 = arith.constant 0 : index
    %c0_2 = arith.constant 0 : index
    %1 = vector.load %arg2[%c0_1, %c0_2] : memref<16x1xf32, #tpu.memory_space<vmem>>, vector<16x1xf32>
    %2 = vector.broadcast %1 : vector<16x1xf32> to vector<16x512xf32>
    %3 = vector.broadcast %0 : vector<1x512xf32> to vector<16x512xf32>
    %4 = arith.mulf %2, %3 : vector<16x512xf32>
    %c0_3 = arith.constant 0 : index
    %c0_4 = arith.constant 0 : index
    %5 = vector.load %arg3[%c0_3, %c0_4] : memref<16x1xf32, #tpu.memory_space<vmem>>, vector<16x1xf32>
    %6 = vector.broadcast %5 : vector<16x1xf32> to vector<16x512xf32>
    %7 = arith.addf %4, %6 : vector<16x512xf32>
    %cst = arith.constant 1.000000e-01 : f32
    %8 = vector.broadcast %cst : f32 to vector<16x512xf32>
    %9 = arith.mulf %8, %7 : vector<16x512xf32>
    %10 = arith.maximumf %7, %9 : vector<16x512xf32>
    %c0_5 = arith.constant 0 : index
    %c0_6 = arith.constant 0 : index
    %11 = vector.load %arg4[%c0_5, %c0_6] : memref<16x16xf32, #tpu.memory_space<vmem>>, vector<16x16xf32>
    %cst_7 = arith.constant dense<0.000000e+00> : vector<16x512xf32>
    %12 = tpu.matmul %11, %10, %cst_7 {dimension_numbers = #tpu.dot_dimension_numbers<[1], [0], [0], [1], [0, 0, 1, 1], [], []>, precision = #tpu.contract_precision<fp32>} : vector<16x16xf32>, vector<16x512xf32>, vector<16x512xf32> -> vector<16x512xf32>
    %cst_8 = arith.constant 1.000000e-01 : f32
    %13 = vector.broadcast %cst_8 : f32 to vector<16x512xf32>
    %14 = arith.mulf %13, %12 : vector<16x512xf32>
    %15 = arith.maximumf %12, %14 : vector<16x512xf32>
    %c0_9 = arith.constant 0 : index
    %c0_10 = arith.constant 0 : index
    %16 = vector.load %arg5[%c0_9, %c0_10] : memref<1x16xf32, #tpu.memory_space<vmem>>, vector<1x16xf32>
    %cst_11 = arith.constant dense<0.000000e+00> : vector<1x512xf32>
    %17 = tpu.matmul %16, %15, %cst_11 {dimension_numbers = #tpu.dot_dimension_numbers<[1], [0], [0], [1], [0, 0, 1, 1], [], []>, precision = #tpu.contract_precision<fp32>} : vector<1x16xf32>, vector<16x512xf32>, vector<1x512xf32> -> vector<1x512xf32>
    %c0_12 = arith.constant 0 : index
    %c0_13 = arith.constant 0 : index
    %18 = vector.load %arg6[%c0_12, %c0_13] : memref<1x1xf32, #tpu.memory_space<vmem>>, vector<1x1xf32>
    %19 = vector.broadcast %18 : vector<1x1xf32> to vector<1x512xf32>
    %20 = arith.addf %17, %19 : vector<1x512xf32>
    %c0_14 = arith.constant 0 : index
    %c0_15 = arith.constant 0 : index
    %21 = vector.load %arg7[%c0_14, %c0_15] : memref<1x512xf32, #tpu.memory_space<vmem>>, vector<1x512xf32>
    tpu.vector_store %arg7[%c0_14, %c0_15], %20 {strides = array<i32>} : memref<1x512xf32, #tpu.memory_space<vmem>>, vector<1x512xf32>,
    return
  }
  func.func @transform_0(%arg0: i32) -> (i32, i32) {
    %c0_i32 = arith.constant 0 : i32
    %c0_i32_0 = arith.constant 0 : i32
    return %c0_i32, %arg0 : i32, i32
  }
  func.func @transform_1(%arg0: i32) -> (i32, i32) {
    %c0_i32 = arith.constant 0 : i32
    %c0_i32_0 = arith.constant 0 : i32
    %c0_i32_1 = arith.constant 0 : i32
    return %c0_i32, %c0_i32_0 : i32, i32
  }
  func.func @transform_2(%arg0: i32) -> (i32, i32) {
    %c0_i32 = arith.constant 0 : i32
    %c0_i32_0 = arith.constant 0 : i32
    %c0_i32_1 = arith.constant 0 : i32
    return %c0_i32, %c0_i32_0 : i32, i32
  }
  func.func @transform_3(%arg0: i32) -> (i32, i32) {
    %c0_i32 = arith.constant 0 : i32
    %c0_i32_0 = arith.constant 0 : i32
    %c0_i32_1 = arith.constant 0 : i32
    return %c0_i32, %c0_i32_0 : i32, i32
  }
  func.func @transform_4(%arg0: i32) -> (i32, i32) {
    %c0_i32 = arith.constant 0 : i32
    %c0_i32_0 = arith.constant 0 : i32
    %c0_i32_1 = arith.constant 0 : i32
    return %c0_i32, %c0_i32_0 : i32, i32
  }
  func.func @transform_5(%arg0: i32) -> (i32, i32) {
    %c0_i32 = arith.constant 0 : i32
    %c0_i32_0 = arith.constant 0 : i32
    %c0_i32_1 = arith.constant 0 : i32
    return %c0_i32, %c0_i32_0 : i32, i32
  }
  func.func @transform_6(%arg0: i32) -> (i32, i32) {
    %c0_i32 = arith.constant 0 : i32
    %c0_i32_0 = arith.constant 0 : i32
    return %c0_i32, %arg0 : i32, i32
  }
}

</mosaic_0001>

<llo_original>
// kernel: regressor_forward.1
$region0: #{regressor_forward.1}
  #allocation0 [shape = 'u32[]', space=smem, size = 0x4, offset = 0x4, fixed_abs, tag = 'smem constant byte address 0x4 - core index']
  #allocation1 [shape = 'u32[144,128]{1,0:T(1,128)}', space=vmem, size = 0x12000, scoped, tag = 'internal scratch']
  #allocation2 [shape = 'f32[1,1]{1,0:T(1,128)S(1)}', space=vmem, size = 0x200, scoped, tag = 'scoped memory for regressor_forward.1']
  %s0 = inlined_call_operand.vmem [shape: f32[1,1000], index: 0, kind: input, shape index: {}]
  %s1 = inlined_call_operand.vmem [shape: f32[16,1], index: 1, kind: input, shape index: {}]
  %s2 = inlined_call_operand.vmem [shape: f32[16,1], index: 2, kind: input, shape index: {}]
  %s3 = inlined_call_operand.vmem [shape: f32[16,16], index: 3, kind: input, shape index: {}]
  %s4 = inlined_call_operand.vmem [shape: f32[1,16], index: 4, kind: input, shape index: {}]
  %s5 = inlined_call_operand.<no memory space> [shape: f32[1,1], index: 5, kind: input, shape index: {}]
  %s6 = inlined_call_operand.hbm [shape: f32[1,1000], index: 6, kind: output, shape index: {}]
  %s7 = sld [smem:[#allocation0]]
  $region57: #{regressor_forward.1} parent=0
    _
  %s9 = ssub.s32 1, %s7
  %s10 = scalar_select 0, %s9, %s7
  %v11 = vstv %s5
  %12 = vst [vmem:[#allocation2] sm:$0x1] %v11
  $region1: #{regressor_forward.1} parent=0
    #allocation3 [shape = 'u8[4096]{0}', space=vmem, size = 0x1000, scoped, tag = 'output window, operand 0']
    #allocation4 [shape = 's32[2]{0}', space=sflag, size = 0x8, scoped, tag = 'scoped memory for regressor_forward.1']
    %13 = vsyncpa [#allocation4], 0
    %s14 = scalar_lea.sflag [#allocation4], 1
    %15 = vsyncpa %s14, 0
    loop: start=0, step=1, limit=4
    $region2: #{regressor_forward.1} parent=1 // loop_pre_header
      _
    $region3: #{regressor_forward.1} parent=1 // loop_header
      %s17 = sphi 0, %s21
      %p18 = scmp.ge.s32.totalorder %s17, 4
      %s27 = sphi 0, %s29
      %s30 = sphi 0, %s27
      %s31 = sphi 0, %s30
      %s47 = sphi 0, %s31
      %s51 = sphi 0, %s51
      %s53 = sphi 0, %s51
      %s54 = sphi 0, %s53
      %s68 = sphi 0, %s54
      %s72 = sphi 0, %s72
      %s74 = sphi 0, %s72
      %s75 = sphi 0, %s74
      %s89 = sphi 0, %s75
      %s93 = sphi 0, %s93
      %s95 = sphi 0, %s93
      %s96 = sphi 0, %s95
      %s110 = sphi 0, %s96
      %s114 = sphi 0, %s114
      %s116 = sphi 0, %s114
      %s117 = sphi 0, %s116
      %s131 = sphi 0, %s117
      %s135 = sphi 0, %s135
      %s137 = sphi 0, %s135
      %s138 = sphi 0, %s137
      %s152 = sphi 0, %s138
      %s158 = sphi 0, %s160
      %s161 = sphi 0, %s158
      %s162 = sphi 0, %s161
      %s178 = sphi 0, %s162
    $region4: #{regressor_forward.1} parent=1 // loop_header_branch
      %20 = sbr.rel (%p18) target = $region8
    $region5: #{regressor_forward.1} parent=1 // loop_body
      %s22 = ssub.s32 %s17, 1
      %s23 = ssub.s32 %s17, 2
      %s24 = sadd.s32 %s17, 1
      %s25 = ssub.s32 %s17, %s24
      %p26 = scmp.eq.s32.totalorder %s25, 0
      %s28 = sadd.s32 %s27, 1
      %s29 = scalar_select %p26, %s27, %s28
      %p32 = pneg %p26
      %p33 = scmp.eq.s32.totalorder %s17, 1
      %p34 = por %p32, %p33
      %p35 = scmp.ne.s32.totalorder %s27, %s30
      %p36 = scmp.eq.s32.totalorder %s17, 0
      %p37 = por %p35, %p36
      %p38 = scmp.ne.s32.totalorder %s27, %s30
      %p39 = scmp.eq.s32.totalorder %s22, 1
      %p40 = por %p38, %p39
      %p41 = scmp.ne.s32.totalorder %s30, %s31
      %p42 = scmp.eq.s32.totalorder %s22, 0
      %p43 = por %p41, %p42
      %p44 = scmp.ne.s32.totalorder %s30, %s31
      %p45 = scmp.eq.s32.totalorder %s23, 1
      %p46 = por %p44, %p45
      %p48 = scmp.ne.s32.totalorder %s31, %s47
      %p49 = scmp.eq.s32.totalorder %s23, 0
      %p50 = por %p48, %p49
      %s52 = sadd.s32 %s51, 1
      %p55 = scmp.eq.s32.totalorder %s17, 1
      %p56 = scmp.ne.s32.totalorder %s51, %s53
      %p57 = scmp.eq.s32.totalorder %s17, 0
      %p58 = por %p56, %p57
      %p59 = scmp.ne.s32.totalorder %s51, %s53
      %p60 = scmp.eq.s32.totalorder %s22, 1
      %p61 = por %p59, %p60
      %p62 = scmp.ne.s32.totalorder %s53, %s54
      %p63 = scmp.eq.s32.totalorder %s22, 0
      %p64 = por %p62, %p63
      %p65 = scmp.ne.s32.totalorder %s53, %s54
      %p66 = scmp.eq.s32.totalorder %s23, 1
      %p67 = por %p65, %p66
      %p69 = scmp.ne.s32.totalorder %s54, %s68
      %p70 = scmp.eq.s32.totalorder %s23, 0
      %p71 = por %p69, %p70
      %s73 = sadd.s32 %s72, 1
      %p76 = scmp.eq.s32.totalorder %s17, 1
      %p77 = scmp.ne.s32.totalorder %s72, %s74
      %p78 = scmp.eq.s32.totalorder %s17, 0
      %p79 = por %p77, %p78
      %p80 = scmp.ne.s32.totalorder %s72, %s74
      %p81 = scmp.eq.s32.totalorder %s22, 1
      %p82 = por %p80, %p81
      %p83 = scmp.ne.s32.totalorder %s74, %s75
      %p84 = scmp.eq.s32.totalorder %s22, 0
      %p85 = por %p83, %p84
      %p86 = scmp.ne.s32.totalorder %s74, %s75
      %p87 = scmp.eq.s32.totalorder %s23, 1
      %p88 = por %p86, %p87
      %p90 = scmp.ne.s32.totalorder %s75, %s89
      %p91 = scmp.eq.s32.totalorder %s23, 0
      %p92 = por %p90, %p91
      %s94 = sadd.s32 %s93, 1
      %p97 = scmp.eq.s32.totalorder %s17, 1
      %p98 = scmp.ne.s32.totalorder %s93, %s95
      %p99 = scmp.eq.s32.totalorder %s17, 0
      %p100 = por %p98, %p99
      %p101 = scmp.ne.s32.totalorder %s93, %s95
      %p102 = scmp.eq.s32.totalorder %s22, 1
      %p103 = por %p101, %p102
      %p104 = scmp.ne.s32.totalorder %s95, %s96
      %p105 = scmp.eq.s32.totalorder %s22, 0
      %p106 = por %p104, %p105
      %p107 = scmp.ne.s32.totalorder %s95, %s96
      %p108 = scmp.eq.s32.totalorder %s23, 1
      %p109 = por %p107, %p108
      %p111 = scmp.ne.s32.totalorder %s96, %s110
      %p112 = scmp.eq.s32.totalorder %s23, 0
      %p113 = por %p111, %p112
      %s115 = sadd.s32 %s114, 1
      %p118 = scmp.eq.s32.totalorder %s17, 1
      %p119 = scmp.ne.s32.totalorder %s114, %s116
      %p120 = scmp.eq.s32.totalorder %s17, 0
      %p121 = por %p119, %p120
      %p122 = scmp.ne.s32.totalorder %s114, %s116
      %p123 = scmp.eq.s32.totalorder %s22, 1
      %p124 = por %p122, %p123
      %p125 = scmp.ne.s32.totalorder %s116, %s117
      %p126 = scmp.eq.s32.totalorder %s22, 0
      %p127 = por %p125, %p126
      %p128 = scmp.ne.s32.totalorder %s116, %s117
      %p129 = scmp.eq.s32.totalorder %s23, 1
      %p130 = por %p128, %p129
      %p132 = scmp.ne.s32.totalorder %s117, %s131
      %p133 = scmp.eq.s32.totalorder %s23, 0
      %p134 = por %p132, %p133
      %s136 = sadd.s32 %s135, 1
      %p139 = scmp.eq.s32.totalorder %s17, 1
      %p140 = scmp.ne.s32.totalorder %s135, %s137
      %p141 = scmp.eq.s32.totalorder %s17, 0
      %p142 = por %p140, %p141
      %p143 = scmp.ne.s32.totalorder %s135, %s137
      %p144 = scmp.eq.s32.totalorder %s22, 1
      %p145 = por %p143, %p144
      %p146 = scmp.ne.s32.totalorder %s137, %s138
      %p147 = scmp.eq.s32.totalorder %s22, 0
      %p148 = por %p146, %p147
      %p149 = scmp.ne.s32.totalorder %s137, %s138
      %p150 = scmp.eq.s32.totalorder %s23, 1
      %p151 = por %p149, %p150
      %p153 = scmp.ne.s32.totalorder %s138, %s152
      %p154 = scmp.eq.s32.totalorder %s23, 0
      %p155 = por %p153, %p154
      %s156 = ssub.s32 %s17, %s24
      %p157 = scmp.eq.s32.totalorder %s156, 0
      %s159 = sadd.s32 %s158, 1
      %s160 = scalar_select %p157, %s158, %s159
      %p163 = pneg %p157
      %p164 = scmp.eq.s32.totalorder %s17, 1
      %p165 = por %p163, %p164
      %p166 = scmp.ne.s32.totalorder %s158, %s161
      %p167 = scmp.eq.s32.totalorder %s17, 0
      %p168 = por %p166, %p167
      %p169 = scmp.ne.s32.totalorder %s158, %s161
      %p170 = scmp.eq.s32.totalorder %s22, 1
      %p171 = por %p169, %p170
      %p172 = scmp.ne.s32.totalorder %s161, %s162
      %p173 = scmp.eq.s32.totalorder %s22, 0
      %p174 = por %p172, %p173
      %p175 = scmp.ne.s32.totalorder %s161, %s162
      %p176 = scmp.eq.s32.totalorder %s23, 1
      %p177 = por %p175, %p176
      %p179 = scmp.ne.s32.totalorder %s162, %s178
      %p180 = scmp.eq.s32.totalorder %s23, 0
      %p181 = por %p179, %p180
      %p182 = scmp.le.s32.totalorder 1, %s17
      %p183 = scmp.lt.s32.totalorder %s17, 3
      %p184 = pnand %p182, %p183
      %p185 = pneg %p184
      // Predicated region
      $region9: #{regressor_forward.1} parent=5 // pred_check
        _
      $region10: #{regressor_forward.1} parent=5 // pred_check_branch
        %187 = sbr.rel (%p184) target = $region12
      $region11: #{regressor_forward.1} parent=5 // pred_region
        %s188 = ssub.s32 %s17, 1
        // Predicated region
        $region13: #{regressor_forward.1} parent=11 // pred_check
          %p189 = pneg %p64
        $region14: #{regressor_forward.1} parent=11 // pred_check_branch
          %191 = sbr.rel (%p189) target = $region16
        $region15: #{regressor_forward.1} parent=11 // pred_region
          _
        $region16: #{regressor_forward.1} parent=11 // pred_fallthru
          _
        // Predicated region
        $region17: #{regressor_forward.1} parent=11 // pred_check
          %p192 = pneg %p85
        $region18: #{regressor_forward.1} parent=11 // pred_check_branch
          %194 = sbr.rel (%p192) target = $region20
        $region19: #{regressor_forward.1} parent=11 // pred_region
          _
        $region20: #{regressor_forward.1} parent=11 // pred_fallthru
          _
        // Predicated region
        $region21: #{regressor_forward.1} parent=11 // pred_check
          %p195 = pneg %p106
        $region22: #{regressor_forward.1} parent=11 // pred_check_branch
          %197 = sbr.rel (%p195) target = $region24
        $region23: #{regressor_forward.1} parent=11 // pred_region
          _
        $region24: #{regressor_forward.1} parent=11 // pred_fallthru
          _
        // Predicated region
        $region25: #{regressor_forward.1} parent=11 // pred_check
          %p198 = pneg %p127
        $region26: #{regressor_forward.1} parent=11 // pred_check_branch
          %200 = sbr.rel (%p198) target = $region28
        $region27: #{regressor_forward.1} parent=11 // pred_region
          _
        $region28: #{regressor_forward.1} parent=11 // pred_fallthru
          _
        // Predicated region
        $region29: #{regressor_forward.1} parent=11 // pred_check
          %p201 = pneg %p148
        $region30: #{regressor_forward.1} parent=11 // pred_check_branch
          %203 = sbr.rel (%p201) target = $region32
        $region31: #{regressor_forward.1} parent=11 // pred_region
          _
        $region32: #{regressor_forward.1} parent=11 // pred_fallthru
          _
      $region12: #{regressor_forward.1} parent=5 // pred_fallthru
        _
      %p204 = scmp.lt.s32.totalorder %s17, 2
      // Predicated region
      $region33: #{regressor_forward.1} parent=5 // pred_check
        %p205 = pneg %p204
      $region34: #{regressor_forward.1} parent=5 // pred_check_branch
        %207 = sbr.rel (%p205) target = $region36
      $region35: #{regressor_forward.1} parent=5 // pred_region
        // Predicated region
        $region37: #{regressor_forward.1} parent=35 // pred_check
          %p208 = pneg %p37
        $region38: #{regressor_forward.1} parent=35 // pred_check_branch
          %210 = sbr.rel (%p208) target = $region40
        $region39: #{regressor_forward.1} parent=35 // pred_region
          %s211 = smul.u32 4, %s17
          %p212 = scmp.lt.s32.totalorder %s211, 7
          %s213 = scalar_select %p212, %s211, 7
          %s214 = scalar_lea.vmem %s0, %s213
          %s215 = smul.u32 4, %s17
        $region40: #{regressor_forward.1} parent=35 // pred_fallthru
          _
      $region36: #{regressor_forward.1} parent=5 // pred_fallthru
        _
      %p216 = scmp.le.s32.totalorder 1, %s17
      %p217 = scmp.lt.s32.totalorder %s17, 3
      %p218 = pnand %p216, %p217
      %p219 = pneg %p218
      // Predicated region
      $region41: #{regressor_forward.1} parent=5 // pred_check
        _
      $region42: #{regressor_forward.1} parent=5 // pred_check_branch
        %221 = sbr.rel (%p218) target = $region44
      $region43: #{regressor_forward.1} parent=5 // pred_region
        %s222 = ssub.s32 %s17, 1
        %s223 = smul.u32 4, %s22
        %p224 = scmp.lt.s32.totalorder %s223, 7
        %s225 = scalar_select %p224, %s223, 7
        %s226 = scalar_lea.vmem %s0, %s225
        %p227 = pneg %p43
        %p228 = pneg %p40
        %p229 = pneg %p64
        %p230 = pneg %p61
        %p231 = pneg %p85
        %p232 = pneg %p82
        %p233 = pneg %p106
        %p234 = pneg %p103
        %p235 = pneg %p127
        %p236 = pneg %p124
        %p237 = pneg %p148
        %p238 = pneg %p145
        %p239 = pneg %p174
        %p240 = pneg %p171
        %s241 = sand.u32 %s161, 1
        %s242 = scalar_lea.sflag [#allocation4], %s241
        %s243 = sand.u32 %s161, 1
        %s244 = smul.addr %s243, 4
        %s245 = scalar_lea.vmem [#allocation3], %s244
        %s246 = smul.u32 4, %s22
        %p247 = scmp.lt.s32.totalorder %s246, 7
        %s248 = scalar_select %p247, %s246, 7
        %s249 = scalar_lea.vmem %s0, %s248
        %s250 = smul.u32 4, %s22
        %s251 = smul.u32 4, %s22
        %v252 = vld [vmem:[%s249] sm:$0xf]
        %v253 = vld [vmem:[%s1] sm:$0xff]
        %v254 = vld [vmem:[%s1 + $0x8] sm:$0xff]
        %256 = vset.pattern.permute.xlu0 0
        %257 = vperm.xlu0 %256, %v253
        %v258 = vpop.permute.xlu0 %257
        %261 = vset.pattern.permute.xlu0 0
        %262 = vperm.xlu0 %261, %v254
        %v263 = vpop.permute.xlu0 %262
        %v266 = vlaneseq
        %v267 = vshrl.u32 %v266, 7
        %v268 = vsub.s32 0, %v267
        %v269 = vrot.slane %v252, %v268
        %v270 = vlaneseq
        %v271 = vshrl.u32 %v270, 7
        %v272 = vsub.s32 1, %v271
        %v273 = vrot.slane %v252, %v272
        %v274 = vlaneseq
        %v275 = vshrl.u32 %v274, 7
        %v276 = vsub.s32 2, %v275
        %v277 = vrot.slane %v252, %v276
        %v278 = vlaneseq
        %v279 = vshrl.u32 %v278, 7
        %v280 = vsub.s32 3, %v279
        %v281 = vrot.slane %v252, %v280
        %v286 = vmul.f32 %v258, %v269
        %v287 = vmul.f32 %v258, %v273
        %v288 = vmul.f32 %v258, %v277
        %v289 = vmul.f32 %v258, %v281
        %v290 = vmul.f32 %v263, %v269
        %v291 = vmul.f32 %v263, %v273
        %v292 = vmul.f32 %v263, %v277
        %v293 = vmul.f32 %v263, %v281
        %v294 = vld [vmem:[%s2] sm:$0xff]
        %v295 = vld [vmem:[%s2 + $0x8] sm:$0xff]
        %297 = vset.pattern.permute.xlu0 0
        %298 = vperm.xlu0 %297, %v294
        %v299 = vpop.permute.xlu0 %298
        %302 = vset.pattern.permute.xlu0 0
        %303 = vperm.xlu0 %302, %v295
        %v304 = vpop.permute.xlu0 %303
        %v306 = vadd.f32 %v286, %v299
        %v307 = vadd.f32 %v287, %v299
        %v308 = vadd.f32 %v288, %v299
        %v309 = vadd.f32 %v289, %v299
        %v310 = vadd.f32 %v290, %v304
        %v311 = vadd.f32 %v291, %v304
        %v312 = vadd.f32 %v292, %v304
        %v313 = vadd.f32 %v293, %v304
        %v314 = vmul.f32 %v306, 0.1
        %v315 = vmul.f32 %v307, 0.1
        %v316 = vmul.f32 %v308, 0.1
        %v317 = vmul.f32 %v309, 0.1
        %v318 = vmul.f32 %v310, 0.1
        %v319 = vmul.f32 %v311, 0.1
        %v320 = vmul.f32 %v312, 0.1
        %v321 = vmul.f32 %v313, 0.1
        %v322 = vmax.f32 %v306, %v314
        %v323 = vmax.f32 %v307, %v315
        %v324 = vmax.f32 %v308, %v316
        %v325 = vmax.f32 %v309, %v317
        %v326 = vmax.f32 %v310, %v318
        %v327 = vmax.f32 %v311, %v319
        %v328 = vmax.f32 %v312, %v320
        %v329 = vmax.f32 %v313, %v321
        %v330 = vld [vmem:[%s3] sm:$0xff]
        %v331 = vld [vmem:[%s3 + $0x8] sm:$0xff]
        %vm332 = vcmask 130048
        %v334 = vsel %vm332, %v330, 0
        %v337 = vsel %vm332, %v331, 0
        %v339 = vand.u32 %v323, 4294901760
        %340 = vmatprep.subr.mxu0 %v339
        %v341 = vand.u32 %v322, 4294901760
        %342 = vmatpush1.msra.mxu0 %v341
        %v343 = vand.u32 %v327, 4294901760
        %344 = vmatprep.subr.mxu0 %v343
        %v345 = vand.u32 %v326, 4294901760
        %346 = vmatpush1.msra.mxu0 %v345
        %347 = vmatprep.subr.mxu0 0.0
        %348 = vmatpush1.msra.mxu0 0.0
        %349 = vmatprep.subr.mxu0 0.0
        %350 = vmatpush1.msra.mxu0 0.0
        %351 = vmatprep.subr.mxu0 0.0
        %352 = vmatpush1.msra.mxu0 0.0
        %353 = vmatprep.subr.mxu0 0.0
        %354 = vmatpush1.msra.mxu0 0.0
        %355 = vmatprep.subr.mxu0 0.0
        %356 = vmatpush1.msra.mxu0 0.0
        %357 = vmatprep.subr.mxu0 0.0
        %358 = vmatpush1.msra.mxu0 0.0
        %359 = vmatprep.subr.mxu0 0.0
        %360 = vmatpush1.msra.mxu0 0.0
        %361 = vmatprep.subr.mxu0 0.0
        %362 = vmatpush1.msra.mxu0 0.0
        %363 = vmatprep.subr.mxu0 0.0
        %364 = vmatpush1.msra.mxu0 0.0
        %365 = vmatprep.subr.mxu0 0.0
        %366 = vmatpush1.msra.mxu0 0.0
        %367 = vmatprep.subr.mxu0 0.0
        %368 = vmatpush1.msra.mxu0 0.0
        %369 = vmatprep.subr.mxu0 0.0
        %370 = vmatpush1.msra.mxu0 0.0
        %371 = vmatprep.subr.mxu0 0.0
        %372 = vmatpush1.msra.mxu0 0.0
        %373 = vmatprep.subr.mxu0 0.0
        %374 = vmatpush1.msra.mxu0 0.0
        %375 = vmatprep.subr.mxu0 0.0
        %376 = vmatpush1.msra.mxu0 0.0
        %377 = vmatprep.subr.mxu0 0.0
        %378 = vmatpush1.msra.mxu0 0.0
        %379 = vmatprep.subr.mxu0 0.0
        %380 = vmatpush1.msra.mxu0 0.0
        %381 = vmatprep.subr.mxu0 0.0
        %382 = vmatpush1.msra.mxu0 0.0
        %383 = vmatprep.subr.mxu0 0.0
        %384 = vmatpush1.msra.mxu0 0.0
        %385 = vmatprep.subr.mxu0 0.0
        %386 = vmatpush1.msra.mxu0 0.0
        %387 = vmatprep.subr.mxu0 0.0
        %388 = vmatpush1.msra.mxu0 0.0
        %389 = vmatprep.subr.mxu0 0.0
        %390 = vmatpush1.msra.mxu0 0.0
        %391 = vmatprep.subr.mxu0 0.0
        %392 = vmatpush1.msra.mxu0 0.0
        %393 = vmatprep.subr.mxu0 0.0
        %394 = vmatpush1.msra.mxu0 0.0
        %395 = vmatprep.subr.mxu0 0.0
        %396 = vmatpush1.msra.mxu0 0.0
        %397 = vmatprep.subr.mxu0 0.0
        %398 = vmatpush1.msra.mxu0 0.0
        %399 = vmatprep.subr.mxu0 0.0
        %400 = vmatpush1.msra.mxu0 0.0
        %401 = vmatprep.subr.mxu0 0.0
        %402 = vmatpush1.msra.mxu0 0.0
        %403 = vmatprep.subr.mxu0 0.0
        %404 = vmatpush1.msra.mxu0 0.0
        %405 = vmatprep.subr.mxu0 0.0
        %406 = vmatpush1.msra.mxu0 0.0
        %407 = vmatprep.mubr.f32.mxu0 0.0
        %v408 = vand.u32 %v334, 4294901760
        %v409 = vsub.f32 %v334, %v408
        %v410 = vand.u32 %v409, 4294901760
        %v411 = vsub.f32 %v409, %v410
        %v412 = vand.u32 %v411, 4294901760
        %413 = vmatmul.mubr.f32.gmra.mrb[0].mxu0 %v412
        %v414 = vpop.f32.mrb[0].mxu0
        %v415 = vadd.f32 0.0, %v414
        %v416 = vpop.f32.mrb[0].mxu0
        %v417 = vadd.f32 0.0, %v416
        %418 = vmatprep.mubr.f32.mxu0 0.0
        %v419 = vand.u32 %v337, 4294901760
        %v420 = vsub.f32 %v337, %v419
        %v421 = vand.u32 %v420, 4294901760
        %v422 = vsub.f32 %v420, %v421
        %v423 = vand.u32 %v422, 4294901760
        %424 = vmatmul.mubr.f32.gmra.mrb[0].mxu0 %v423
        %v425 = vpop.f32.mrb[0].mxu0
        %v426 = vadd.f32 0.0, %v425
        %v427 = vpop.f32.mrb[0].mxu0
        %v428 = vadd.f32 0.0, %v427
        %429 = vdwg.mxu0
        %v430 = vand.u32 %v323, 4294901760
        %v431 = vsub.f32 %v323, %v430
        %v432 = vand.u32 %v431, 4294901760
        %v433 = vsub.f32 %v431, %v432
        %v434 = vand.u32 %v433, 4294901760
        %435 = vmatprep.subr.mxu0 %v434
        %v436 = vand.u32 %v322, 4294901760
        %v437 = vsub.f32 %v322, %v436
        %v438 = vand.u32 %v437, 4294901760
        %v439 = vsub.f32 %v437, %v438
        %v440 = vand.u32 %v439, 4294901760
        %441 = vmatpush1.msra.mxu0 %v440
        %v442 = vand.u32 %v327, 4294901760
        %v443 = vsub.f32 %v327, %v442
        %v444 = vand.u32 %v443, 4294901760
        %v445 = vsub.f32 %v443, %v444
        %v446 = vand.u32 %v445, 4294901760
        %447 = vmatprep.subr.mxu0 %v446
        %v448 = vand.u32 %v326, 4294901760
        %v449 = vsub.f32 %v326, %v448
        %v450 = vand.u32 %v449, 4294901760
        %v451 = vsub.f32 %v449, %v450
        %v452 = vand.u32 %v451, 4294901760
        %453 = vmatpush1.msra.mxu0 %v452
        %454 = vmatprep.subr.mxu0 0.0
        %455 = vmatpush1.msra.mxu0 0.0
        %456 = vmatprep.subr.mxu0 0.0
        %457 = vmatpush1.msra.mxu0 0.0
        %458 = vmatprep.subr.mxu0 0.0
        %459 = vmatpush1.msra.mxu0 0.0
        %460 = vmatprep.subr.mxu0 0.0
        %461 = vmatpush1.msra.mxu0 0.0
        %462 = vmatprep.subr.mxu0 0.0
        %463 = vmatpush1.msra.mxu0 0.0
        %464 = vmatprep.subr.mxu0 0.0
        %465 = vmatpush1.msra.mxu0 0.0
        %466 = vmatprep.subr.mxu0 0.0
        %467 = vmatpush1.msra.mxu0 0.0
        %468 = vmatprep.subr.mxu0 0.0
        %469 = vmatpush1.msra.mxu0 0.0
        %470 = vmatprep.subr.mxu0 0.0
        %471 = vmatpush1.msra.mxu0 0.0
        %472 = vmatprep.subr.mxu0 0.0
        %473 = vmatpush1.msra.mxu0 0.0
        %474 = vmatprep.subr.mxu0 0.0
        %475 = vmatpush1.msra.mxu0 0.0
        %476 = vmatprep.subr.mxu0 0.0
        %477 = vmatpush1.msra.mxu0 0.0
        %478 = vmatprep.subr.mxu0 0.0
        %479 = vmatpush1.msra.mxu0 0.0
        %480 = vmatprep.subr.mxu0 0.0
        %481 = vmatpush1.msra.mxu0 0.0
        %482 = vmatprep.subr.mxu0 0.0
        %483 = vmatpush1.msra.mxu0 0.0
        %484 = vmatprep.subr.mxu0 0.0
        %485 = vmatpush1.msra.mxu0 0.0
        %486 = vmatprep.subr.mxu0 0.0
        %487 = vmatpush1.msra.mxu0 0.0
        %488 = vmatprep.subr.mxu0 0.0
        %489 = vmatpush1.msra.mxu0 0.0
        %490 = vmatprep.subr.mxu0 0.0
        %491 = vmatpush1.msra.mxu0 0.0
        %492 = vmatprep.subr.mxu0 0.0
        %493 = vmatpush1.msra.mxu0 0.0
        %494 = vmatprep.subr.mxu0 0.0
        %495 = vmatpush1.msra.mxu0 0.0
        %496 = vmatprep.subr.mxu0 0.0
        %497 = vmatpush1.msra.mxu0 0.0
        %498 = vmatprep.subr.mxu0 0.0
        %499 = vmatpush1.msra.mxu0 0.0
        %500 = vmatprep.subr.mxu0 0.0
        %501 = vmatpush1.msra.mxu0 0.0
        %502 = vmatprep.subr.mxu0 0.0
        %503 = vmatpush1.msra.mxu0 0.0
        %504 = vmatprep.subr.mxu0 0.0
        %505 = vmatpush1.msra.mxu0 0.0
        %506 = vmatprep.subr.mxu0 0.0
        %507 = vmatpush1.msra.mxu0 0.0
        %508 = vmatprep.subr.mxu0 0.0
        %509 = vmatpush1.msra.mxu0 0.0
        %510 = vmatprep.subr.mxu0 0.0
        %511 = vmatpush1.msra.mxu0 0.0
        %512 = vmatprep.subr.mxu0 0.0
        %513 = vmatpush1.msra.mxu0 0.0
        %514 = vmatprep.mubr.f32.mxu0 0.0
        %v515 = vand.u32 %v334, 4294901760
        %516 = vmatmul.mubr.f32.gmra.mrb[0].mxu0 %v515
        %v517 = vpop.f32.mrb[0].mxu0
        %v518 = vadd.f32 %v415, %v517
        %v519 = vpop.f32.mrb[0].mxu0
        %v520 = vadd.f32 %v417, %v519
        %521 = vmatprep.mubr.f32.mxu0 0.0
        %v522 = vand.u32 %v337, 4294901760
        %523 = vmatmul.mubr.f32.gmra.mrb[0].mxu0 %v522
        %v524 = vpop.f32.mrb[0].mxu0
        %v525 = vadd.f32 %v426, %v524
        %v526 = vpop.f32.mrb[0].mxu0
        %v527 = vadd.f32 %v428, %v526
        %528 = vdwg.mxu0
        %v529 = vand.u32 %v323, 4294901760
        %v530 = vsub.f32 %v323, %v529
        %531 = vmatprep.subr.mxu0 %v530
        %v532 = vand.u32 %v322, 4294901760
        %v533 = vsub.f32 %v322, %v532
        %534 = vmatpush1.msra.mxu0 %v533
        %v535 = vand.u32 %v327, 4294901760
        %v536 = vsub.f32 %v327, %v535
        %537 = vmatprep.subr.mxu0 %v536
        %v538 = vand.u32 %v326, 4294901760
        %v539 = vsub.f32 %v326, %v538
        %540 = vmatpush1.msra.mxu0 %v539
        %541 = vmatprep.subr.mxu0 0.0
        %542 = vmatpush1.msra.mxu0 0.0
        %543 = vmatprep.subr.mxu0 0.0
        %544 = vmatpush1.msra.mxu0 0.0
        %545 = vmatprep.subr.mxu0 0.0
        %546 = vmatpush1.msra.mxu0 0.0
        %547 = vmatprep.subr.mxu0 0.0
        %548 = vmatpush1.msra.mxu0 0.0
        %549 = vmatprep.subr.mxu0 0.0
        %550 = vmatpush1.msra.mxu0 0.0
        %551 = vmatprep.subr.mxu0 0.0
        %552 = vmatpush1.msra.mxu0 0.0
        %553 = vmatprep.subr.mxu0 0.0
        %554 = vmatpush1.msra.mxu0 0.0
        %555 = vmatprep.subr.mxu0 0.0
        %556 = vmatpush1.msra.mxu0 0.0
        %557 = vmatprep.subr.mxu0 0.0
        %558 = vmatpush1.msra.mxu0 0.0
        %559 = vmatprep.subr.mxu0 0.0
        %560 = vmatpush1.msra.mxu0 0.0
        %561 = vmatprep.subr.mxu0 0.0
        %562 = vmatpush1.msra.mxu0 0.0
        %563 = vmatprep.subr.mxu0 0.0
        %564 = vmatpush1.msra.mxu0 0.0
        %565 = vmatprep.subr.mxu0 0.0
        %566 = vmatpush1.msra.mxu0 0.0
        %567 = vmatprep.subr.mxu0 0.0
        %568 = vmatpush1.msra.mxu0 0.0
        %569 = vmatprep.subr.mxu0 0.0
        %570 = vmatpush1.msra.mxu0 0.0
        %571 = vmatprep.subr.mxu0 0.0
        %572 = vmatpush1.msra.mxu0 0.0
        %573 = vmatprep.subr.mxu0 0.0
        %574 = vmatpush1.msra.mxu0 0.0
        %575 = vmatprep.subr.mxu0 0.0
        %576 = vmatpush1.msra.mxu0 0.0
        %577 = vmatprep.subr.mxu0 0.0
        %578 = vmatpush1.msra.mxu0 0.0
        %579 = vmatprep.subr.mxu0 0.0
        %580 = vmatpush1.msra.mxu0 0.0
        %581 = vmatprep.subr.mxu0 0.0
        %582 = vmatpush1.msra.mxu0 0.0
        %583 = vmatprep.subr.mxu0 0.0
        %584 = vmatpush1.msra.mxu0 0.0
        %585 = vmatprep.subr.mxu0 0.0
        %586 = vmatpush1.msra.mxu0 0.0
        %587 = vmatprep.subr.mxu0 0.0
        %588 = vmatpush1.msra.mxu0 0.0
        %589 = vmatprep.subr.mxu0 0.0
        %590 = vmatpush1.msra.mxu0 0.0
        %591 = vmatprep.subr.mxu0 0.0
        %592 = vmatpush1.msra.mxu0 0.0
        %593 = vmatprep.subr.mxu0 0.0
        %594 = vmatpush1.msra.mxu0 0.0
        %595 = vmatprep.subr.mxu0 0.0
        %596 = vmatpush1.msra.mxu0 0.0
        %597 = vmatprep.subr.mxu0 0.0
        %598 = vmatpush1.msra.mxu0 0.0
        %599 = vmatprep.subr.mxu0 0.0
        %600 = vmatpush1.msra.mxu0 0.0
        %601 = vmatprep.mubr.f32.mxu0 0.0
        %v602 = vand.u32 %v334, 4294901760
        %v603 = vsub.f32 %v334, %v602
        %604 = vmatmul.mubr.f32.gmra.mrb[0].mxu0 %v603
        %v605 = vpop.f32.mrb[0].mxu0
        %v606 = vadd.f32 %v518, %v605
        %v607 = vpop.f32.mrb[0].mxu0
        %v608 = vadd.f32 %v520, %v607
        %609 = vmatprep.mubr.f32.mxu0 0.0
        %v610 = vand.u32 %v337, 4294901760
        %v611 = vsub.f32 %v337, %v610
        %612 = vmatmul.mubr.f32.gmra.mrb[0].mxu0 %v611
        %v613 = vpop.f32.mrb[0].mxu0
        %v614 = vadd.f32 %v525, %v613
        %v615 = vpop.f32.mrb[0].mxu0
        %v616 = vadd.f32 %v527, %v615
        %617 = vdwg.mxu0
        %v618 = vand.u32 %v323, 4294901760
        %619 = vmatprep.subr.mxu0 %v618
        %v620 = vand.u32 %v322, 4294901760
        %621 = vmatpush1.msra.mxu0 %v620
        %v622 = vand.u32 %v327, 4294901760
        %623 = vmatprep.subr.mxu0 %v622
        %v624 = vand.u32 %v326, 4294901760
        %625 = vmatpush1.msra.mxu0 %v624
        %626 = vmatprep.subr.mxu0 0.0
        %627 = vmatpush1.msra.mxu0 0.0
        %628 = vmatprep.subr.mxu0 0.0
        %629 = vmatpush1.msra.mxu0 0.0
        %630 = vmatprep.subr.mxu0 0.0
        %631 = vmatpush1.msra.mxu0 0.0
        %632 = vmatprep.subr.mxu0 0.0
        %633 = vmatpush1.msra.mxu0 0.0
        %634 = vmatprep.subr.mxu0 0.0
        %635 = vmatpush1.msra.mxu0 0.0
        %636 = vmatprep.subr.mxu0 0.0
        %637 = vmatpush1.msra.mxu0 0.0
        %638 = vmatprep.subr.mxu0 0.0
        %639 = vmatpush1.msra.mxu0 0.0
        %640 = vmatprep.subr.mxu0 0.0
        %641 = vmatpush1.msra.mxu0 0.0
        %642 = vmatprep.subr.mxu0 0.0
        %643 = vmatpush1.msra.mxu0 0.0
        %644 = vmatprep.subr.mxu0 0.0
        %645 = vmatpush1.msra.mxu0 0.0
        %646 = vmatprep.subr.mxu0 0.0
        %647 = vmatpush1.msra.mxu0 0.0
        %648 = vmatprep.subr.mxu0 0.0
        %649 = vmatpush1.msra.mxu0 0.0
        %650 = vmatprep.subr.mxu0 0.0
        %651 = vmatpush1.msra.mxu0 0.0
        %652 = vmatprep.subr.mxu0 0.0
        %653 = vmatpush1.msra.mxu0 0.0
        %654 = vmatprep.subr.mxu0 0.0
        %655 = vmatpush1.msra.mxu0 0.0
        %656 = vmatprep.subr.mxu0 0.0
        %657 = vmatpush1.msra.mxu0 0.0
        %658 = vmatprep.subr.mxu0 0.0
        %659 = vmatpush1.msra.mxu0 0.0
        %660 = vmatprep.subr.mxu0 0.0
        %661 = vmatpush1.msra.mxu0 0.0
        %662 = vmatprep.subr.mxu0 0.0
        %663 = vmatpush1.msra.mxu0 0.0
        %664 = vmatprep.subr.mxu0 0.0
        %665 = vmatpush1.msra.mxu0 0.0
        %666 = vmatprep.subr.mxu0 0.0
        %667 = vmatpush1.msra.mxu0 0.0
        %668 = vmatprep.subr.mxu0 0.0
        %669 = vmatpush1.msra.mxu0 0.0
        %670 = vmatprep.subr.mxu0 0.0
        %671 = vmatpush1.msra.mxu0 0.0
        %672 = vmatprep.subr.mxu0 0.0
        %673 = vmatpush1.msra.mxu0 0.0
        %674 = vmatprep.subr.mxu0 0.0
        %675 = vmatpush1.msra.mxu0 0.0
        %676 = vmatprep.subr.mxu0 0.0
        %677 = vmatpush1.msra.mxu0 0.0
        %678 = vmatprep.subr.mxu0 0.0
        %679 = vmatpush1.msra.mxu0 0.0
        %680 = vmatprep.subr.mxu0 0.0
        %681 = vmatpush1.msra.mxu0 0.0
        %682 = vmatprep.subr.mxu0 0.0
        %683 = vmatpush1.msra.mxu0 0.0
        %684 = vmatprep.subr.mxu0 0.0
        %685 = vmatpush1.msra.mxu0 0.0
        %686 = vmatprep.mubr.f32.mxu0 0.0
        %v687 = vand.u32 %v334, 4294901760
        %v688 = vsub.f32 %v334, %v687
        %v689 = vand.u32 %v688, 4294901760
        %690 = vmatmul.mubr.f32.gmra.mrb[0].mxu0 %v689
        %v691 = vpop.f32.mrb[0].mxu0
        %v692 = vadd.f32 %v606, %v691
        %v693 = vpop.f32.mrb[0].mxu0
        %v694 = vadd.f32 %v608, %v693
        %695 = vmatprep.mubr.f32.mxu0 0.0
        %v696 = vand.u32 %v337, 4294901760
        %v697 = vsub.f32 %v337, %v696
        %v698 = vand.u32 %v697, 4294901760
        %699 = vmatmul.mubr.f32.gmra.mrb[0].mxu0 %v698
        %v700 = vpop.f32.mrb[0].mxu0
        %v701 = vadd.f32 %v614, %v700
        %v702 = vpop.f32.mrb[0].mxu0
        %v703 = vadd.f32 %v616, %v702
        %704 = vdwg.mxu0
        %v705 = vand.u32 %v323, 4294901760
        %v706 = vsub.f32 %v323, %v705
        %v707 = vand.u32 %v706, 4294901760
        %708 = vmatprep.subr.mxu0 %v707
        %v709 = vand.u32 %v322, 4294901760
        %v710 = vsub.f32 %v322, %v709
        %v711 = vand.u32 %v710, 4294901760
        %712 = vmatpush1.msra.mxu0 %v711
        %v713 = vand.u32 %v327, 4294901760
        %v714 = vsub.f32 %v327, %v713
        %v715 = vand.u32 %v714, 4294901760
        %716 = vmatprep.subr.mxu0 %v715
        %v717 = vand.u32 %v326, 4294901760
        %v718 = vsub.f32 %v326, %v717
        %v719 = vand.u32 %v718, 4294901760
        %720 = vmatpush1.msra.mxu0 %v719
        %721 = vmatprep.subr.mxu0 0.0
        %722 = vmatpush1.msra.mxu0 0.0
        %723 = vmatprep.subr.mxu0 0.0
        %724 = vmatpush1.msra.mxu0 0.0
        %725 = vmatprep.subr.mxu0 0.0
        %726 = vmatpush1.msra.mxu0 0.0
        %727 = vmatprep.subr.mxu0 0.0
        %728 = vmatpush1.msra.mxu0 0.0
        %729 = vmatprep.subr.mxu0 0.0
        %730 = vmatpush1.msra.mxu0 0.0
        %731 = vmatprep.subr.mxu0 0.0
        %732 = vmatpush1.msra.mxu0 0.0
        %733 = vmatprep.subr.mxu0 0.0
        %734 = vmatpush1.msra.mxu0 0.0
        %735 = vmatprep.subr.mxu0 0.0
        %736 = vmatpush1.msra.mxu0 0.0
        %737 = vmatprep.subr.mxu0 0.0
        %738 = vmatpush1.msra.mxu0 0.0
        %739 = vmatprep.subr.mxu0 0.0
        %740 = vmatpush1.msra.mxu0 0.0
        %741 = vmatprep.subr.mxu0 0.0
        %742 = vmatpush1.msra.mxu0 0.0
        %743 = vmatprep.subr.mxu0 0.0
        %744 = vmatpush1.msra.mxu0 0.0
        %745 = vmatprep.subr.mxu0 0.0
        %746 = vmatpush1.msra.mxu0 0.0
        %747 = vmatprep.subr.mxu0 0.0
        %748 = vmatpush1.msra.mxu0 0.0
        %749 = vmatprep.subr.mxu0 0.0
        %750 = vmatpush1.msra.mxu0 0.0
        %751 = vmatprep.subr.mxu0 0.0
        %752 = vmatpush1.msra.mxu0 0.0
        %753 = vmatprep.subr.mxu0 0.0
        %754 = vmatpush1.msra.mxu0 0.0
        %755 = vmatprep.subr.mxu0 0.0
        %756 = vmatpush1.msra.mxu0 0.0
        %757 = vmatprep.subr.mxu0 0.0
        %758 = vmatpush1.msra.mxu0 0.0
        %759 = vmatprep.subr.mxu0 0.0
        %760 = vmatpush1.msra.mxu0 0.0
        %761 = vmatprep.subr.mxu0 0.0
        %762 = vmatpush1.msra.mxu0 0.0
        %763 = vmatprep.subr.mxu0 0.0
        %764 = vmatpush1.msra.mxu0 0.0
        %765 = vmatprep.subr.mxu0 0.0
        %766 = vmatpush1.msra.mxu0 0.0
        %767 = vmatprep.subr.mxu0 0.0
        %768 = vmatpush1.msra.mxu0 0.0
        %769 = vmatprep.subr.mxu0 0.0
        %770 = vmatpush1.msra.mxu0 0.0
        %771 = vmatprep.subr.mxu0 0.0
        %772 = vmatpush1.msra.mxu0 0.0
        %773 = vmatprep.subr.mxu0 0.0
        %774 = vmatpush1.msra.mxu0 0.0
        %775 = vmatprep.subr.mxu0 0.0
        %776 = vmatpush1.msra.mxu0 0.0
        %777 = vmatprep.subr.mxu0 0.0
        %778 = vmatpush1.msra.mxu0 0.0
        %779 = vmatprep.subr.mxu0 0.0
        %780 = vmatpush1.msra.mxu0 0.0
        %781 = vmatprep.mubr.f32.mxu0 0.0
        %v782 = vand.u32 %v334, 4294901760
        %783 = vmatmul.mubr.f32.gmra.mrb[0].mxu0 %v782
        %v784 = vpop.f32.mrb[0].mxu0
        %v785 = vadd.f32 %v692, %v784
        %v786 = vpop.f32.mrb[0].mxu0
        %v787 = vadd.f32 %v694, %v786
        %788 = vmatprep.mubr.f32.mxu0 0.0
        %v789 = vand.u32 %v337, 4294901760
        %790 = vmatmul.mubr.f32.gmra.mrb[0].mxu0 %v789
        %v791 = vpop.f32.mrb[0].mxu0
        %v792 = vadd.f32 %v701, %v791
        %v793 = vpop.f32.mrb[0].mxu0
        %v794 = vadd.f32 %v703, %v793
        %795 = vdwg.mxu0
        %v796 = vand.u32 %v323, 4294901760
        %797 = vmatprep.subr.mxu0 %v796
        %v798 = vand.u32 %v322, 4294901760
        %799 = vmatpush1.msra.mxu0 %v798
        %v800 = vand.u32 %v327, 4294901760
        %801 = vmatprep.subr.mxu0 %v800
        %v802 = vand.u32 %v326, 4294901760
        %803 = vmatpush1.msra.mxu0 %v802
        %804 = vmatprep.subr.mxu0 0.0
        %805 = vmatpush1.msra.mxu0 0.0
        %806 = vmatprep.subr.mxu0 0.0
        %807 = vmatpush1.msra.mxu0 0.0
        %808 = vmatprep.subr.mxu0 0.0
        %809 = vmatpush1.msra.mxu0 0.0
        %810 = vmatprep.subr.mxu0 0.0
        %811 = vmatpush1.msra.mxu0 0.0
        %812 = vmatprep.subr.mxu0 0.0
        %813 = vmatpush1.msra.mxu0 0.0
        %814 = vmatprep.subr.mxu0 0.0
        %815 = vmatpush1.msra.mxu0 0.0
        %816 = vmatprep.subr.mxu0 0.0
        %817 = vmatpush1.msra.mxu0 0.0
        %818 = vmatprep.subr.mxu0 0.0
        %819 = vmatpush1.msra.mxu0 0.0
        %820 = vmatprep.subr.mxu0 0.0
        %821 = vmatpush1.msra.mxu0 0.0
        %822 = vmatprep.subr.mxu0 0.0
        %823 = vmatpush1.msra.mxu0 0.0
        %824 = vmatprep.subr.mxu0 0.0
        %825 = vmatpush1.msra.mxu0 0.0
        %826 = vmatprep.subr.mxu0 0.0
        %827 = vmatpush1.msra.mxu0 0.0
        %828 = vmatprep.subr.mxu0 0.0
        %829 = vmatpush1.msra.mxu0 0.0
        %830 = vmatprep.subr.mxu0 0.0
        %831 = vmatpush1.msra.mxu0 0.0
        %832 = vmatprep.subr.mxu0 0.0
        %833 = vmatpush1.msra.mxu0 0.0
        %834 = vmatprep.subr.mxu0 0.0
        %835 = vmatpush1.msra.mxu0 0.0
        %836 = vmatprep.subr.mxu0 0.0
        %837 = vmatpush1.msra.mxu0 0.0
        %838 = vmatprep.subr.mxu0 0.0
        %839 = vmatpush1.msra.mxu0 0.0
        %840 = vmatprep.subr.mxu0 0.0
        %841 = vmatpush1.msra.mxu0 0.0
        %842 = vmatprep.subr.mxu0 0.0
        %843 = vmatpush1.msra.mxu0 0.0
        %844 = vmatprep.subr.mxu0 0.0
        %845 = vmatpush1.msra.mxu0 0.0
        %846 = vmatprep.subr.mxu0 0.0
        %847 = vmatpush1.msra.mxu0 0.0
        %848 = vmatprep.subr.mxu0 0.0
        %849 = vmatpush1.msra.mxu0 0.0
        %850 = vmatprep.subr.mxu0 0.0
        %851 = vmatpush1.msra.mxu0 0.0
        %852 = vmatprep.subr.mxu0 0.0
        %853 = vmatpush1.msra.mxu0 0.0
        %854 = vmatprep.subr.mxu0 0.0
        %855 = vmatpush1.msra.mxu0 0.0
        %856 = vmatprep.subr.mxu0 0.0
        %857 = vmatpush1.msra.mxu0 0.0
        %858 = vmatprep.subr.mxu0 0.0
        %859 = vmatpush1.msra.mxu0 0.0
        %860 = vmatprep.subr.mxu0 0.0
        %861 = vmatpush1.msra.mxu0 0.0
        %862 = vmatprep.subr.mxu0 0.0
        %863 = vmatpush1.msra.mxu0 0.0
        %864 = vmatprep.mubr.f32.mxu0 0.0
        %v865 = vand.u32 %v334, 4294901760
        %866 = vmatmul.mubr.f32.gmra.mrb[0].mxu0 %v865
        %v867 = vpop.f32.mrb[0].mxu0
        %v868 = vadd.f32 %v785, %v867
        %v869 = vpop.f32.mrb[0].mxu0
        %v870 = vadd.f32 %v787, %v869
        %871 = vmatprep.mubr.f32.mxu0 0.0
        %v872 = vand.u32 %v337, 4294901760
        %873 = vmatmul.mubr.f32.gmra.mrb[0].mxu0 %v872
        %v874 = vpop.f32.mrb[0].mxu0
        %v875 = vadd.f32 %v792, %v874
        %v876 = vpop.f32.mrb[0].mxu0
        %v877 = vadd.f32 %v794, %v876
        %878 = vdwg.mxu0
        %v879 = vand.u32 %v325, 4294901760
        %880 = vmatprep.subr.mxu0 %v879
        %v881 = vand.u32 %v324, 4294901760
        %882 = vmatpush1.msra.mxu0 %v881
        %v883 = vand.u32 %v329, 4294901760
        %884 = vmatprep.subr.mxu0 %v883
        %v885 = vand.u32 %v328, 4294901760
        %886 = vmatpush1.msra.mxu0 %v885
        %887 = vmatprep.subr.mxu0 0.0
        %888 = vmatpush1.msra.mxu0 0.0
        %889 = vmatprep.subr.mxu0 0.0
        %890 = vmatpush1.msra.mxu0 0.0
        %891 = vmatprep.subr.mxu0 0.0
        %892 = vmatpush1.msra.mxu0 0.0
        %893 = vmatprep.subr.mxu0 0.0
        %894 = vmatpush1.msra.mxu0 0.0
        %895 = vmatprep.subr.mxu0 0.0
        %896 = vmatpush1.msra.mxu0 0.0
        %897 = vmatprep.subr.mxu0 0.0
        %898 = vmatpush1.msra.mxu0 0.0
        %899 = vmatprep.subr.mxu0 0.0
        %900 = vmatpush1.msra.mxu0 0.0
        %901 = vmatprep.subr.mxu0 0.0
        %902 = vmatpush1.msra.mxu0 0.0
        %903 = vmatprep.subr.mxu0 0.0
        %904 = vmatpush1.msra.mxu0 0.0
        %905 = vmatprep.subr.mxu0 0.0
        %906 = vmatpush1.msra.mxu0 0.0
        %907 = vmatprep.subr.mxu0 0.0
        %908 = vmatpush1.msra.mxu0 0.0
        %909 = vmatprep.subr.mxu0 0.0
        %910 = vmatpush1.msra.mxu0 0.0
        %911 = vmatprep.subr.mxu0 0.0
        %912 = vmatpush1.msra.mxu0 0.0
        %913 = vmatprep.subr.mxu0 0.0
        %914 = vmatpush1.msra.mxu0 0.0
        %915 = vmatprep.subr.mxu0 0.0
        %916 = vmatpush1.msra.mxu0 0.0
        %917 = vmatprep.subr.mxu0 0.0
        %918 = vmatpush1.msra.mxu0 0.0
        %919 = vmatprep.subr.mxu0 0.0
        %920 = vmatpush1.msra.mxu0 0.0
        %921 = vmatprep.subr.mxu0 0.0
        %922 = vmatpush1.msra.mxu0 0.0
        %923 = vmatprep.subr.mxu0 0.0
        %924 = vmatpush1.msra.mxu0 0.0
        %925 = vmatprep.subr.mxu0 0.0
        %926 = vmatpush1.msra.mxu0 0.0
        %927 = vmatprep.subr.mxu0 0.0
        %928 = vmatpush1.msra.mxu0 0.0
        %929 = vmatprep.subr.mxu0 0.0
        %930 = vmatpush1.msra.mxu0 0.0
        %931 = vmatprep.subr.mxu0 0.0
        %932 = vmatpush1.msra.mxu0 0.0
        %933 = vmatprep.subr.mxu0 0.0
        %934 = vmatpush1.msra.mxu0 0.0
        %935 = vmatprep.subr.mxu0 0.0
        %936 = vmatpush1.msra.mxu0 0.0
        %937 = vmatprep.subr.mxu0 0.0
        %938 = vmatpush1.msra.mxu0 0.0
        %939 = vmatprep.subr.mxu0 0.0
        %940 = vmatpush1.msra.mxu0 0.0
        %941 = vmatprep.subr.mxu0 0.0
        %942 = vmatpush1.msra.mxu0 0.0
        %943 = vmatprep.subr.mxu0 0.0
        %944 = vmatpush1.msra.mxu0 0.0
        %945 = vmatprep.subr.mxu0 0.0
        %946 = vmatpush1.msra.mxu0 0.0
        %947 = vmatprep.mubr.f32.mxu0 0.0
        %v948 = vand.u32 %v334, 4294901760
        %v949 = vsub.f32 %v334, %v948
        %v950 = vand.u32 %v949, 4294901760
        %v951 = vsub.f32 %v949, %v950
        %v952 = vand.u32 %v951, 4294901760
        %953 = vmatmul.mubr.f32.gmra.mrb[0].mxu0 %v952
        %v954 = vpop.f32.mrb[0].mxu0
        %v955 = vadd.f32 0.0, %v954
        %v956 = vpop.f32.mrb[0].mxu0
        %v957 = vadd.f32 0.0, %v956
        %958 = vmatprep.mubr.f32.mxu0 0.0
        %v959 = vand.u32 %v337, 4294901760
        %v960 = vsub.f32 %v337, %v959
        %v961 = vand.u32 %v960, 4294901760
        %v962 = vsub.f32 %v960, %v961
        %v963 = vand.u32 %v962, 4294901760
        %964 = vmatmul.mubr.f32.gmra.mrb[0].mxu0 %v963
        %v965 = vpop.f32.mrb[0].mxu0
        %v966 = vadd.f32 0.0, %v965
        %v967 = vpop.f32.mrb[0].mxu0
        %v968 = vadd.f32 0.0, %v967
        %969 = vdwg.mxu0
        %v970 = vand.u32 %v325, 4294901760
        %v971 = vsub.f32 %v325, %v970
        %v972 = vand.u32 %v971, 4294901760
        %v973 = vsub.f32 %v971, %v972
        %v974 = vand.u32 %v973, 4294901760
        %975 = vmatprep.subr.mxu0 %v974
        %v976 = vand.u32 %v324, 4294901760
        %v977 = vsub.f32 %v324, %v976
        %v978 = vand.u32 %v977, 4294901760
        %v979 = vsub.f32 %v977, %v978
        %v980 = vand.u32 %v979, 4294901760
        %981 = vmatpush1.msra.mxu0 %v980
        %v982 = vand.u32 %v329, 4294901760
        %v983 = vsub.f32 %v329, %v982
        %v984 = vand.u32 %v983, 4294901760
        %v985 = vsub.f32 %v983, %v984
        %v986 = vand.u32 %v985, 4294901760
        %987 = vmatprep.subr.mxu0 %v986
        %v988 = vand.u32 %v328, 4294901760
        %v989 = vsub.f32 %v328, %v988
        %v990 = vand.u32 %v989, 4294901760
        %v991 = vsub.f32 %v989, %v990
        %v992 = vand.u32 %v991, 4294901760
        %993 = vmatpush1.msra.mxu0 %v992
        %994 = vmatprep.subr.mxu0 0.0
        %995 = vmatpush1.msra.mxu0 0.0
        %996 = vmatprep.subr.mxu0 0.0
        %997 = vmatpush1.msra.mxu0 0.0
        %998 = vmatprep.subr.mxu0 0.0
        %999 = vmatpush1.msra.mxu0 0.0
        %1000 = vmatprep.subr.mxu0 0.0
        %1001 = vmatpush1.msra.mxu0 0.0
        %1002 = vmatprep.subr.mxu0 0.0
        %1003 = vmatpush1.msra.mxu0 0.0
        %1004 = vmatprep.subr.mxu0 0.0
        %1005 = vmatpush1.msra.mxu0 0.0
        %1006 = vmatprep.subr.mxu0 0.0
        %1007 = vmatpush1.msra.mxu0 0.0
        %1008 = vmatprep.subr.mxu0 0.0
        %1009 = vmatpush1.msra.mxu0 0.0
        %1010 = vmatprep.subr.mxu0 0.0
        %1011 = vmatpush1.msra.mxu0 0.0
        %1012 = vmatprep.subr.mxu0 0.0
        %1013 = vmatpush1.msra.mxu0 0.0
        %1014 = vmatprep.subr.mxu0 0.0
        %1015 = vmatpush1.msra.mxu0 0.0
        %1016 = vmatprep.subr.mxu0 0.0
        %1017 = vmatpush1.msra.mxu0 0.0
        %1018 = vmatprep.subr.mxu0 0.0
        %1019 = vmatpush1.msra.mxu0 0.0
        %1020 = vmatprep.subr.mxu0 0.0
        %1021 = vmatpush1.msra.mxu0 0.0
        %1022 = vmatprep.subr.mxu0 0.0
        %1023 = vmatpush1.msra.mxu0 0.0
        %1024 = vmatprep.subr.mxu0 0.0
        %1025 = vmatpush1.msra.mxu0 0.0
        %1026 = vmatprep.subr.mxu0 0.0
        %1027 = vmatpush1.msra.mxu0 0.0
        %1028 = vmatprep.subr.mxu0 0.0
        %1029 = vmatpush1.msra.mxu0 0.0
        %1030 = vmatprep.subr.mxu0 0.0
        %1031 = vmatpush1.msra.mxu0 0.0
        %1032 = vmatprep.subr.mxu0 0.0
        %1033 = vmatpush1.msra.mxu0 0.0
        %1034 = vmatprep.subr.mxu0 0.0
        %1035 = vmatpush1.msra.mxu0 0.0
        %1036 = vmatprep.subr.mxu0 0.0
        %1037 = vmatpush1.msra.mxu0 0.0
        %1038 = vmatprep.subr.mxu0 0.0
        %1039 = vmatpush1.msra.mxu0 0.0
        %1040 = vmatprep.subr.mxu0 0.0
        %1041 = vmatpush1.msra.mxu0 0.0
        %1042 = vmatprep.subr.mxu0 0.0
        %1043 = vmatpush1.msra.mxu0 0.0
        %1044 = vmatprep.subr.mxu0 0.0
        %1045 = vmatpush1.msra.mxu0 0.0
        %1046 = vmatprep.subr.mxu0 0.0
        %1047 = vmatpush1.msra.mxu0 0.0
        %1048 = vmatprep.subr.mxu0 0.0
        %1049 = vmatpush1.msra.mxu0 0.0
        %1050 = vmatprep.subr.mxu0 0.0
        %1051 = vmatpush1.msra.mxu0 0.0
        %1052 = vmatprep.subr.mxu0 0.0
        %1053 = vmatpush1.msra.mxu0 0.0
        %1054 = vmatprep.mubr.f32.mxu0 0.0
        %v1055 = vand.u32 %v334, 4294901760
        %1056 = vmatmul.mubr.f32.gmra.mrb[0].mxu0 %v1055
        %v1057 = vpop.f32.mrb[0].mxu0
        %v1058 = vadd.f32 %v955, %v1057
        %v1059 = vpop.f32.mrb[0].mxu0
        %v1060 = vadd.f32 %v957, %v1059
        %1061 = vmatprep.mubr.f32.mxu0 0.0
        %v1062 = vand.u32 %v337, 4294901760
        %1063 = vmatmul.mubr.f32.gmra.mrb[0].mxu0 %v1062
        %v1064 = vpop.f32.mrb[0].mxu0
        %v1065 = vadd.f32 %v966, %v1064
        %v1066 = vpop.f32.mrb[0].mxu0
        %v1067 = vadd.f32 %v968, %v1066
        %1068 = vdwg.mxu0
        %v1069 = vand.u32 %v325, 4294901760
        %v1070 = vsub.f32 %v325, %v1069
        %1071 = vmatprep.subr.mxu0 %v1070
        %v1072 = vand.u32 %v324, 4294901760
        %v1073 = vsub.f32 %v324, %v1072
        %1074 = vmatpush1.msra.mxu0 %v1073
        %v1075 = vand.u32 %v329, 4294901760
        %v1076 = vsub.f32 %v329, %v1075
        %1077 = vmatprep.subr.mxu0 %v1076
        %v1078 = vand.u32 %v328, 4294901760
        %v1079 = vsub.f32 %v328, %v1078
        %1080 = vmatpush1.msra.mxu0 %v1079
        %1081 = vmatprep.subr.mxu0 0.0
        %1082 = vmatpush1.msra.mxu0 0.0
        %1083 = vmatprep.subr.mxu0 0.0
        %1084 = vmatpush1.msra.mxu0 0.0
        %1085 = vmatprep.subr.mxu0 0.0
        %1086 = vmatpush1.msra.mxu0 0.0
        %1087 = vmatprep.subr.mxu0 0.0
        %1088 = vmatpush1.msra.mxu0 0.0
        %1089 = vmatprep.subr.mxu0 0.0
        %1090 = vmatpush1.msra.mxu0 0.0
        %1091 = vmatprep.subr.mxu0 0.0
        %1092 = vmatpush1.msra.mxu0 0.0
        %1093 = vmatprep.subr.mxu0 0.0
        %1094 = vmatpush1.msra.mxu0 0.0
        %1095 = vmatprep.subr.mxu0 0.0
        %1096 = vmatpush1.msra.mxu0 0.0
        %1097 = vmatprep.subr.mxu0 0.0
        %1098 = vmatpush1.msra.mxu0 0.0
        %1099 = vmatprep.subr.mxu0 0.0
        %1100 = vmatpush1.msra.mxu0 0.0
        %1101 = vmatprep.subr.mxu0 0.0
        %1102 = vmatpush1.msra.mxu0 0.0
        %1103 = vmatprep.subr.mxu0 0.0
        %1104 = vmatpush1.msra.mxu0 0.0
        %1105 = vmatprep.subr.mxu0 0.0
        %1106 = vmatpush1.msra.mxu0 0.0
        %1107 = vmatprep.subr.mxu0 0.0
        %1108 = vmatpush1.msra.mxu0 0.0
        %1109 = vmatprep.subr.mxu0 0.0
        %1110 = vmatpush1.msra.mxu0 0.0
        %1111 = vmatprep.subr.mxu0 0.0
        %1112 = vmatpush1.msra.mxu0 0.0
        %1113 = vmatprep.subr.mxu0 0.0
        %1114 = vmatpush1.msra.mxu0 0.0
        %1115 = vmatprep.subr.mxu0 0.0
        %1116 = vmatpush1.msra.mxu0 0.0
        %1117 = vmatprep.subr.mxu0 0.0
        %1118 = vmatpush1.msra.mxu0 0.0
        %1119 = vmatprep.subr.mxu0 0.0
        %1120 = vmatpush1.msra.mxu0 0.0
        %1121 = vmatprep.subr.mxu0 0.0
        %1122 = vmatpush1.msra.mxu0 0.0
        %1123 = vmatprep.subr.mxu0 0.0
        %1124 = vmatpush1.msra.mxu0 0.0
        %1125 = vmatprep.subr.mxu0 0.0
        %1126 = vmatpush1.msra.mxu0 0.0
        %1127 = vmatprep.subr.mxu0 0.0
        %1128 = vmatpush1.msra.mxu0 0.0
        %1129 = vmatprep.subr.mxu0 0.0
        %1130 = vmatpush1.msra.mxu0 0.0
        %1131 = vmatprep.subr.mxu0 0.0
        %1132 = vmatpush1.msra.mxu0 0.0
        %1133 = vmatprep.subr.mxu0 0.0
        %1134 = vmatpush1.msra.mxu0 0.0
        %1135 = vmatprep.subr.mxu0 0.0
        %1136 = vmatpush1.msra.mxu0 0.0
        %1137 = vmatprep.subr.mxu0 0.0
        %1138 = vmatpush1.msra.mxu0 0.0
        %1139 = vmatprep.subr.mxu0 0.0
        %1140 = vmatpush1.msra.mxu0 0.0
        %1141 = vmatprep.mubr.f32.mxu0 0.0
        %v1142 = vand.u32 %v334, 4294901760
        %v1143 = vsub.f32 %v334, %v1142
        %1144 = vmatmul.mubr.f32.gmra.mrb[0].mxu0 %v1143
        %v1145 = vpop.f32.mrb[0].mxu0
        %v1146 = vadd.f32 %v1058, %v1145
        %v1147 = vpop.f32.mrb[0].mxu0
        %v1148 = vadd.f32 %v1060, %v1147
        %1149 = vmatprep.mubr.f32.mxu0 0.0
        %v1150 = vand.u32 %v337, 4294901760
        %v1151 = vsub.f32 %v337, %v1150
        %1152 = vmatmul.mubr.f32.gmra.mrb[0].mxu0 %v1151
        %v1153 = vpop.f32.mrb[0].mxu0
        %v1154 = vadd.f32 %v1065, %v1153
        %v1155 = vpop.f32.mrb[0].mxu0
        %v1156 = vadd.f32 %v1067, %v1155
        %1157 = vdwg.mxu0
        %v1158 = vand.u32 %v325, 4294901760
        %1159 = vmatprep.subr.mxu0 %v1158
        %v1160 = vand.u32 %v324, 4294901760
        %1161 = vmatpush1.msra.mxu0 %v1160
        %v1162 = vand.u32 %v329, 4294901760
        %1163 = vmatprep.subr.mxu0 %v1162
        %v1164 = vand.u32 %v328, 4294901760
        %1165 = vmatpush1.msra.mxu0 %v1164
        %1166 = vmatprep.subr.mxu0 0.0
        %1167 = vmatpush1.msra.mxu0 0.0
        %1168 = vmatprep.subr.mxu0 0.0
        %1169 = vmatpush1.msra.mxu0 0.0
        %1170 = vmatprep.subr.mxu0 0.0
        %1171 = vmatpush1.msra.mxu0 0.0
        %1172 = vmatprep.subr.mxu0 0.0
        %1173 = vmatpush1.msra.mxu0 0.0
        %1174 = vmatprep.subr.mxu0 0.0
        %1175 = vmatpush1.msra.mxu0 0.0
        %1176 = vmatprep.subr.mxu0 0.0
        %1177 = vmatpush1.msra.mxu0 0.0
        %1178 = vmatprep.subr.mxu0 0.0
        %1179 = vmatpush1.msra.mxu0 0.0
        %1180 = vmatprep.subr.mxu0 0.0
        %1181 = vmatpush1.msra.mxu0 0.0
        %1182 = vmatprep.subr.mxu0 0.0
        %1183 = vmatpush1.msra.mxu0 0.0
        %1184 = vmatprep.subr.mxu0 0.0
        %1185 = vmatpush1.msra.mxu0 0.0
        %1186 = vmatprep.subr.mxu0 0.0
        %1187 = vmatpush1.msra.mxu0 0.0
        %1188 = vmatprep.subr.mxu0 0.0
        %1189 = vmatpush1.msra.mxu0 0.0
        %1190 = vmatprep.subr.mxu0 0.0
        %1191 = vmatpush1.msra.mxu0 0.0
        %1192 = vmatprep.subr.mxu0 0.0
        %1193 = vmatpush1.msra.mxu0 0.0
        %1194 = vmatprep.subr.mxu0 0.0
        %1195 = vmatpush1.msra.mxu0 0.0
        %1196 = vmatprep.subr.mxu0 0.0
        %1197 = vmatpush1.msra.mxu0 0.0
        %1198 = vmatprep.subr.mxu0 0.0
        %1199 = vmatpush1.msra.mxu0 0.0
        %1200 = vmatprep.subr.mxu0 0.0
        %1201 = vmatpush1.msra.mxu0 0.0
        %1202 = vmatprep.subr.mxu0 0.0
        %1203 = vmatpush1.msra.mxu0 0.0
        %1204 = vmatprep.subr.mxu0 0.0
        %1205 = vmatpush1.msra.mxu0 0.0
        %1206 = vmatprep.subr.mxu0 0.0
        %1207 = vmatpush1.msra.mxu0 0.0
        %1208 = vmatprep.subr.mxu0 0.0
        %1209 = vmatpush1.msra.mxu0 0.0
        %1210 = vmatprep.subr.mxu0 0.0
        %1211 = vmatpush1.msra.mxu0 0.0
        %1212 = vmatprep.subr.mxu0 0.0
        %1213 = vmatpush1.msra.mxu0 0.0
        %1214 = vmatprep.subr.mxu0 0.0
        %1215 = vmatpush1.msra.mxu0 0.0
        %1216 = vmatprep.subr.mxu0 0.0
        %1217 = vmatpush1.msra.mxu0 0.0
        %1218 = vmatprep.subr.mxu0 0.0
        %1219 = vmatpush1.msra.mxu0 0.0
        %1220 = vmatprep.subr.mxu0 0.0
        %1221 = vmatpush1.msra.mxu0 0.0
        %1222 = vmatprep.subr.mxu0 0.0
        %1223 = vmatpush1.msra.mxu0 0.0
        %1224 = vmatprep.subr.mxu0 0.0
        %1225 = vmatpush1.msra.mxu0 0.0
        %1226 = vmatprep.mubr.f32.mxu0 0.0
        %v1227 = vand.u32 %v334, 4294901760
        %v1228 = vsub.f32 %v334, %v1227
        %v1229 = vand.u32 %v1228, 4294901760
        %1230 = vmatmul.mubr.f32.gmra.mrb[0].mxu0 %v1229
        %v1231 = vpop.f32.mrb[0].mxu0
        %v1232 = vadd.f32 %v1146, %v1231
        %v1233 = vpop.f32.mrb[0].mxu0
        %v1234 = vadd.f32 %v1148, %v1233
        %1235 = vmatprep.mubr.f32.mxu0 0.0
        %v1236 = vand.u32 %v337, 4294901760
        %v1237 = vsub.f32 %v337, %v1236
        %v1238 = vand.u32 %v1237, 4294901760
        %1239 = vmatmul.mubr.f32.gmra.mrb[0].mxu0 %v1238
        %v1240 = vpop.f32.mrb[0].mxu0
        %v1241 = vadd.f32 %v1154, %v1240
        %v1242 = vpop.f32.mrb[0].mxu0
        %v1243 = vadd.f32 %v1156, %v1242
        %1244 = vdwg.mxu0
        %v1245 = vand.u32 %v325, 4294901760
        %v1246 = vsub.f32 %v325, %v1245
        %v1247 = vand.u32 %v1246, 4294901760
        %1248 = vmatprep.subr.mxu0 %v1247
        %v1249 = vand.u32 %v324, 4294901760
        %v1250 = vsub.f32 %v324, %v1249
        %v1251 = vand.u32 %v1250, 4294901760
        %1252 = vmatpush1.msra.mxu0 %v1251
        %v1253 = vand.u32 %v329, 4294901760
        %v1254 = vsub.f32 %v329, %v1253
        %v1255 = vand.u32 %v1254, 4294901760
        %1256 = vmatprep.subr.mxu0 %v1255
        %v1257 = vand.u32 %v328, 4294901760
        %v1258 = vsub.f32 %v328, %v1257
        %v1259 = vand.u32 %v1258, 4294901760
        %1260 = vmatpush1.msra.mxu0 %v1259
        %1261 = vmatprep.subr.mxu0 0.0
        %1262 = vmatpush1.msra.mxu0 0.0
        %1263 = vmatprep.subr.mxu0 0.0
        %1264 = vmatpush1.msra.mxu0 0.0
        %1265 = vmatprep.subr.mxu0 0.0
        %1266 = vmatpush1.msra.mxu0 0.0
        %1267 = vmatprep.subr.mxu0 0.0
        %1268 = vmatpush1.msra.mxu0 0.0
        %1269 = vmatprep.subr.mxu0 0.0
        %1270 = vmatpush1.msra.mxu0 0.0
        %1271 = vmatprep.subr.mxu0 0.0
        %1272 = vmatpush1.msra.mxu0 0.0
        %1273 = vmatprep.subr.mxu0 0.0
        %1274 = vmatpush1.msra.mxu0 0.0
        %1275 = vmatprep.subr.mxu0 0.0
        %1276 = vmatpush1.msra.mxu0 0.0
        %1277 = vmatprep.subr.mxu0 0.0
        %1278 = vmatpush1.msra.mxu0 0.0
        %1279 = vmatprep.subr.mxu0 0.0
        %1280 = vmatpush1.msra.mxu0 0.0
        %1281 = vmatprep.subr.mxu0 0.0
        %1282 = vmatpush1.msra.mxu0 0.0
        %1283 = vmatprep.subr.mxu0 0.0
        %1284 = vmatpush1.msra.mxu0 0.0
        %1285 = vmatprep.subr.mxu0 0.0
        %1286 = vmatpush1.msra.mxu0 0.0
        %1287 = vmatprep.subr.mxu0 0.0
        %1288 = vmatpush1.msra.mxu0 0.0
        %1289 = vmatprep.subr.mxu0 0.0
        %1290 = vmatpush1.msra.mxu0 0.0
        %1291 = vmatprep.subr.mxu0 0.0
        %1292 = vmatpush1.msra.mxu0 0.0
        %1293 = vmatprep.subr.mxu0 0.0
        %1294 = vmatpush1.msra.mxu0 0.0
        %1295 = vmatprep.subr.mxu0 0.0
        %1296 = vmatpush1.msra.mxu0 0.0
        %1297 = vmatprep.subr.mxu0 0.0
        %1298 = vmatpush1.msra.mxu0 0.0
        %1299 = vmatprep.subr.mxu0 0.0
        %1300 = vmatpush1.msra.mxu0 0.0
        %1301 = vmatprep.subr.mxu0 0.0
        %1302 = vmatpush1.msra.mxu0 0.0
        %1303 = vmatprep.subr.mxu0 0.0
        %1304 = vmatpush1.msra.mxu0 0.0
        %1305 = vmatprep.subr.mxu0 0.0
        %1306 = vmatpush1.msra.mxu0 0.0
        %1307 = vmatprep.subr.mxu0 0.0
        %1308 = vmatpush1.msra.mxu0 0.0
        %1309 = vmatprep.subr.mxu0 0.0
        %1310 = vmatpush1.msra.mxu0 0.0
        %1311 = vmatprep.subr.mxu0 0.0
        %1312 = vmatpush1.msra.mxu0 0.0
        %1313 = vmatprep.subr.mxu0 0.0
        %1314 = vmatpush1.msra.mxu0 0.0
        %1315 = vmatprep.subr.mxu0 0.0
        %1316 = vmatpush1.msra.mxu0 0.0
        %1317 = vmatprep.subr.mxu0 0.0
        %1318 = vmatpush1.msra.mxu0 0.0
        %1319 = vmatprep.subr.mxu0 0.0
        %1320 = vmatpush1.msra.mxu0 0.0
        %1321 = vmatprep.mubr.f32.mxu0 0.0
        %v1322 = vand.u32 %v334, 4294901760
        %1323 = vmatmul.mubr.f32.gmra.mrb[0].mxu0 %v1322
        %v1324 = vpop.f32.mrb[0].mxu0
        %v1325 = vadd.f32 %v1232, %v1324
        %v1326 = vpop.f32.mrb[0].mxu0
        %v1327 = vadd.f32 %v1234, %v1326
        %1328 = vmatprep.mubr.f32.mxu0 0.0
        %v1329 = vand.u32 %v337, 4294901760
        %1330 = vmatmul.mubr.f32.gmra.mrb[0].mxu0 %v1329
        %v1331 = vpop.f32.mrb[0].mxu0
        %v1332 = vadd.f32 %v1241, %v1331
        %v1333 = vpop.f32.mrb[0].mxu0
        %v1334 = vadd.f32 %v1243, %v1333
        %1335 = vdwg.mxu0
        %v1336 = vand.u32 %v325, 4294901760
        %1337 = vmatprep.subr.mxu0 %v1336
        %v1338 = vand.u32 %v324, 4294901760
        %1339 = vmatpush1.msra.mxu0 %v1338
        %v1340 = vand.u32 %v329, 4294901760
        %1341 = vmatprep.subr.mxu0 %v1340
        %v1342 = vand.u32 %v328, 4294901760
        %1343 = vmatpush1.msra.mxu0 %v1342
        %1344 = vmatprep.subr.mxu0 0.0
        %1345 = vmatpush1.msra.mxu0 0.0
        %1346 = vmatprep.subr.mxu0 0.0
        %1347 = vmatpush1.msra.mxu0 0.0
        %1348 = vmatprep.subr.mxu0 0.0
        %1349 = vmatpush1.msra.mxu0 0.0
        %1350 = vmatprep.subr.mxu0 0.0
        %1351 = vmatpush1.msra.mxu0 0.0
        %1352 = vmatprep.subr.mxu0 0.0
        %1353 = vmatpush1.msra.mxu0 0.0
        %1354 = vmatprep.subr.mxu0 0.0
        %1355 = vmatpush1.msra.mxu0 0.0
        %1356 = vmatprep.subr.mxu0 0.0
        %1357 = vmatpush1.msra.mxu0 0.0
        %1358 = vmatprep.subr.mxu0 0.0
        %1359 = vmatpush1.msra.mxu0 0.0
        %1360 = vmatprep.subr.mxu0 0.0
        %1361 = vmatpush1.msra.mxu0 0.0
        %1362 = vmatprep.subr.mxu0 0.0
        %1363 = vmatpush1.msra.mxu0 0.0
        %1364 = vmatprep.subr.mxu0 0.0
        %1365 = vmatpush1.msra.mxu0 0.0
        %1366 = vmatprep.subr.mxu0 0.0
        %1367 = vmatpush1.msra.mxu0 0.0
        %1368 = vmatprep.subr.mxu0 0.0
        %1369 = vmatpush1.msra.mxu0 0.0
        %1370 = vmatprep.subr.mxu0 0.0
        %1371 = vmatpush1.msra.mxu0 0.0
        %1372 = vmatprep.subr.mxu0 0.0
        %1373 = vmatpush1.msra.mxu0 0.0
        %1374 = vmatprep.subr.mxu0 0.0
        %1375 = vmatpush1.msra.mxu0 0.0
        %1376 = vmatprep.subr.mxu0 0.0
        %1377 = vmatpush1.msra.mxu0 0.0
        %1378 = vmatprep.subr.mxu0 0.0
        %1379 = vmatpush1.msra.mxu0 0.0
        %1380 = vmatprep.subr.mxu0 0.0
        %1381 = vmatpush1.msra.mxu0 0.0
        %1382 = vmatprep.subr.mxu0 0.0
        %1383 = vmatpush1.msra.mxu0 0.0
        %1384 = vmatprep.subr.mxu0 0.0
        %1385 = vmatpush1.msra.mxu0 0.0
        %1386 = vmatprep.subr.mxu0 0.0
        %1387 = vmatpush1.msra.mxu0 0.0
        %1388 = vmatprep.subr.mxu0 0.0
        %1389 = vmatpush1.msra.mxu0 0.0
        %1390 = vmatprep.subr.mxu0 0.0
        %1391 = vmatpush1.msra.mxu0 0.0
        %1392 = vmatprep.subr.mxu0 0.0
        %1393 = vmatpush1.msra.mxu0 0.0
        %1394 = vmatprep.subr.mxu0 0.0
        %1395 = vmatpush1.msra.mxu0 0.0
        %1396 = vmatprep.subr.mxu0 0.0
        %1397 = vmatpush1.msra.mxu0 0.0
        %1398 = vmatprep.subr.mxu0 0.0
        %1399 = vmatpush1.msra.mxu0 0.0
        %1400 = vmatprep.subr.mxu0 0.0
        %1401 = vmatpush1.msra.mxu0 0.0
        %1402 = vmatprep.subr.mxu0 0.0
        %1403 = vmatpush1.msra.mxu0 0.0
        %1404 = vmatprep.mubr.f32.mxu0 0.0
        %v1405 = vand.u32 %v334, 4294901760
        %1406 = vmatmul.mubr.f32.gmra.mrb[0].mxu0 %v1405
        %v1407 = vpop.f32.mrb[0].mxu0
        %v1408 = vadd.f32 %v1325, %v1407
        %v1409 = vpop.f32.mrb[0].mxu0
        %v1410 = vadd.f32 %v1327, %v1409
        %1411 = vmatprep.mubr.f32.mxu0 0.0
        %v1412 = vand.u32 %v337, 4294901760
        %1413 = vmatmul.mubr.f32.gmra.mrb[0].mxu0 %v1412
        %v1414 = vpop.f32.mrb[0].mxu0
        %v1415 = vadd.f32 %v1332, %v1414
        %v1416 = vpop.f32.mrb[0].mxu0
        %v1417 = vadd.f32 %v1334, %v1416
        %1418 = vdwg.mxu0
        %v1419 = vmul.f32 %v868, 0.1
        %v1420 = vmul.f32 %v870, 0.1
        %v1421 = vmul.f32 %v1408, 0.1
        %v1422 = vmul.f32 %v1410, 0.1
        %v1423 = vmul.f32 %v875, 0.1
        %v1424 = vmul.f32 %v877, 0.1
        %v1425 = vmul.f32 %v1415, 0.1
        %v1426 = vmul.f32 %v1417, 0.1
        %v1427 = vmax.f32 %v868, %v1419
        %v1428 = vmax.f32 %v870, %v1420
        %v1429 = vmax.f32 %v1408, %v1421
        %v1430 = vmax.f32 %v1410, %v1422
        %v1431 = vmax.f32 %v875, %v1423
        %v1432 = vmax.f32 %v877, %v1424
        %v1433 = vmax.f32 %v1415, %v1425
        %v1434 = vmax.f32 %v1417, %v1426
        %v1435 = vld [vmem:[%s4] sm:$0x1]
        %v1436 = vld [vmem:[#allocation2] sm:$0x1]
        %1438 = vset.pattern.permute.xlu0 0
        %1439 = vperm.xlu0 %1438, %v1436
        %v1440 = vpop.permute.xlu0 %1439
        %v1442 = vlaneseq
        %v1443 = vshrl.u32 %v1442, 7
        %v1444 = vsub.s32 0, %v1443
        %v1445 = vrot.slane %v1440, %v1444
        %v1447 = vsel %vm332, %v1435, 0
        %v1449 = vand.u32 %v1428, 4294901760
        %1450 = vmatprep.subr.mxu0 %v1449
        %v1451 = vand.u32 %v1427, 4294901760
        %1452 = vmatpush1.msra.mxu0 %v1451
        %v1453 = vand.u32 %v1432, 4294901760
        %1454 = vmatprep.subr.mxu0 %v1453
        %v1455 = vand.u32 %v1431, 4294901760
        %1456 = vmatpush1.msra.mxu0 %v1455
        %1457 = vmatprep.subr.mxu0 0.0
        %1458 = vmatpush1.msra.mxu0 0.0
        %1459 = vmatprep.subr.mxu0 0.0
        %1460 = vmatpush1.msra.mxu0 0.0
        %1461 = vmatprep.subr.mxu0 0.0
        %1462 = vmatpush1.msra.mxu0 0.0
        %1463 = vmatprep.subr.mxu0 0.0
        %1464 = vmatpush1.msra.mxu0 0.0
        %1465 = vmatprep.subr.mxu0 0.0
        %1466 = vmatpush1.msra.mxu0 0.0
        %1467 = vmatprep.subr.mxu0 0.0
        %1468 = vmatpush1.msra.mxu0 0.0
        %1469 = vmatprep.subr.mxu0 0.0
        %1470 = vmatpush1.msra.mxu0 0.0
        %1471 = vmatprep.subr.mxu0 0.0
        %1472 = vmatpush1.msra.mxu0 0.0
        %1473 = vmatprep.subr.mxu0 0.0
        %1474 = vmatpush1.msra.mxu0 0.0
        %1475 = vmatprep.subr.mxu0 0.0
        %1476 = vmatpush1.msra.mxu0 0.0
        %1477 = vmatprep.subr.mxu0 0.0
        %1478 = vmatpush1.msra.mxu0 0.0
        %1479 = vmatprep.subr.mxu0 0.0
        %1480 = vmatpush1.msra.mxu0 0.0
        %1481 = vmatprep.subr.mxu0 0.0
        %1482 = vmatpush1.msra.mxu0 0.0
        %1483 = vmatprep.subr.mxu0 0.0
        %1484 = vmatpush1.msra.mxu0 0.0
        %1485 = vmatprep.subr.mxu0 0.0
        %1486 = vmatpush1.msra.mxu0 0.0
        %1487 = vmatprep.subr.mxu0 0.0
        %1488 = vmatpush1.msra.mxu0 0.0
        %1489 = vmatprep.subr.mxu0 0.0
        %1490 = vmatpush1.msra.mxu0 0.0
        %1491 = vmatprep.subr.mxu0 0.0
        %1492 = vmatpush1.msra.mxu0 0.0
        %1493 = vmatprep.subr.mxu0 0.0
        %1494 = vmatpush1.msra.mxu0 0.0
        %1495 = vmatprep.subr.mxu0 0.0
        %1496 = vmatpush1.msra.mxu0 0.0
        %1497 = vmatprep.subr.mxu0 0.0
        %1498 = vmatpush1.msra.mxu0 0.0
        %1499 = vmatprep.subr.mxu0 0.0
        %1500 = vmatpush1.msra.mxu0 0.0
        %1501 = vmatprep.subr.mxu0 0.0
        %1502 = vmatpush1.msra.mxu0 0.0
        %1503 = vmatprep.subr.mxu0 0.0
        %1504 = vmatpush1.msra.mxu0 0.0
        %1505 = vmatprep.subr.mxu0 0.0
        %1506 = vmatpush1.msra.mxu0 0.0
        %1507 = vmatprep.subr.mxu0 0.0
        %1508 = vmatpush1.msra.mxu0 0.0
        %1509 = vmatprep.subr.mxu0 0.0
        %1510 = vmatpush1.msra.mxu0 0.0
        %1511 = vmatprep.subr.mxu0 0.0
        %1512 = vmatpush1.msra.mxu0 0.0
        %1513 = vmatprep.subr.mxu0 0.0
        %1514 = vmatpush1.msra.mxu0 0.0
        %1515 = vmatprep.subr.mxu0 0.0
        %1516 = vmatpush1.msra.mxu0 0.0
        %1517 = vmatprep.mubr.f32.mxu0 0.0
        %v1518 = vand.u32 %v1447, 4294901760
        %v1519 = vsub.f32 %v1447, %v1518
        %v1520 = vand.u32 %v1519, 4294901760
        %v1521 = vsub.f32 %v1519, %v1520
        %v1522 = vand.u32 %v1521, 4294901760
        %1523 = vmatmul.mubr.f32.gmra.mrb[0].mxu0 %v1522
        %v1524 = vpop.f32.mrb[0].mxu0
        %v1525 = vadd.f32 %v1445, %v1524
        %v1526 = vpop.f32.mrb[0].mxu0
        %v1527 = vadd.f32 %v1445, %v1526
        %1528 = vdwg.mxu0
        %v1529 = vand.u32 %v1428, 4294901760
        %v1530 = vsub.f32 %v1428, %v1529
        %v1531 = vand.u32 %v1530, 4294901760
        %v1532 = vsub.f32 %v1530, %v1531
        %v1533 = vand.u32 %v1532, 4294901760
        %1534 = vmatprep.subr.mxu0 %v1533
        %v1535 = vand.u32 %v1427, 4294901760
        %v1536 = vsub.f32 %v1427, %v1535
        %v1537 = vand.u32 %v1536, 4294901760
        %v1538 = vsub.f32 %v1536, %v1537
        %v1539 = vand.u32 %v1538, 4294901760
        %1540 = vmatpush1.msra.mxu0 %v1539
        %v1541 = vand.u32 %v1432, 4294901760
        %v1542 = vsub.f32 %v1432, %v1541
        %v1543 = vand.u32 %v1542, 4294901760
        %v1544 = vsub.f32 %v1542, %v1543
        %v1545 = vand.u32 %v1544, 4294901760
        %1546 = vmatprep.subr.mxu0 %v1545
        %v1547 = vand.u32 %v1431, 4294901760
        %v1548 = vsub.f32 %v1431, %v1547
        %v1549 = vand.u32 %v1548, 4294901760
        %v1550 = vsub.f32 %v1548, %v1549
        %v1551 = vand.u32 %v1550, 4294901760
        %1552 = vmatpush1.msra.mxu0 %v1551
        %1553 = vmatprep.subr.mxu0 0.0
        %1554 = vmatpush1.msra.mxu0 0.0
        %1555 = vmatprep.subr.mxu0 0.0
        %1556 = vmatpush1.msra.mxu0 0.0
        %1557 = vmatprep.subr.mxu0 0.0
        %1558 = vmatpush1.msra.mxu0 0.0
        %1559 = vmatprep.subr.mxu0 0.0
        %1560 = vmatpush1.msra.mxu0 0.0
        %1561 = vmatprep.subr.mxu0 0.0
        %1562 = vmatpush1.msra.mxu0 0.0
        %1563 = vmatprep.subr.mxu0 0.0
        %1564 = vmatpush1.msra.mxu0 0.0
        %1565 = vmatprep.subr.mxu0 0.0
        %1566 = vmatpush1.msra.mxu0 0.0
        %1567 = vmatprep.subr.mxu0 0.0
        %1568 = vmatpush1.msra.mxu0 0.0
        %1569 = vmatprep.subr.mxu0 0.0
        %1570 = vmatpush1.msra.mxu0 0.0
        %1571 = vmatprep.subr.mxu0 0.0
        %1572 = vmatpush1.msra.mxu0 0.0
        %1573 = vmatprep.subr.mxu0 0.0
        %1574 = vmatpush1.msra.mxu0 0.0
        %1575 = vmatprep.subr.mxu0 0.0
        %1576 = vmatpush1.msra.mxu0 0.0
        %1577 = vmatprep.subr.mxu0 0.0
        %1578 = vmatpush1.msra.mxu0 0.0
        %1579 = vmatprep.subr.mxu0 0.0
        %1580 = vmatpush1.msra.mxu0 0.0
        %1581 = vmatprep.subr.mxu0 0.0
        %1582 = vmatpush1.msra.mxu0 0.0
        %1583 = vmatprep.subr.mxu0 0.0
        %1584 = vmatpush1.msra.mxu0 0.0
        %1585 = vmatprep.subr.mxu0 0.0
        %1586 = vmatpush1.msra.mxu0 0.0
        %1587 = vmatprep.subr.mxu0 0.0
        %1588 = vmatpush1.msra.mxu0 0.0
        %1589 = vmatprep.subr.mxu0 0.0
        %1590 = vmatpush1.msra.mxu0 0.0
        %1591 = vmatprep.subr.mxu0 0.0
        %1592 = vmatpush1.msra.mxu0 0.0
        %1593 = vmatprep.subr.mxu0 0.0
        %1594 = vmatpush1.msra.mxu0 0.0
        %1595 = vmatprep.subr.mxu0 0.0
        %1596 = vmatpush1.msra.mxu0 0.0
        %1597 = vmatprep.subr.mxu0 0.0
        %1598 = vmatpush1.msra.mxu0 0.0
        %1599 = vmatprep.subr.mxu0 0.0
        %1600 = vmatpush1.msra.mxu0 0.0
        %1601 = vmatprep.subr.mxu0 0.0
        %1602 = vmatpush1.msra.mxu0 0.0
        %1603 = vmatprep.subr.mxu0 0.0
        %1604 = vmatpush1.msra.mxu0 0.0
        %1605 = vmatprep.subr.mxu0 0.0
        %1606 = vmatpush1.msra.mxu0 0.0
        %1607 = vmatprep.subr.mxu0 0.0
        %1608 = vmatpush1.msra.mxu0 0.0
        %1609 = vmatprep.subr.mxu0 0.0
        %1610 = vmatpush1.msra.mxu0 0.0
        %1611 = vmatprep.subr.mxu0 0.0
        %1612 = vmatpush1.msra.mxu0 0.0
        %1613 = vmatprep.mubr.f32.mxu0 0.0
        %v1614 = vand.u32 %v1447, 4294901760
        %1615 = vmatmul.mubr.f32.gmra.mrb[0].mxu0 %v1614
        %v1616 = vpop.f32.mrb[0].mxu0
        %v1617 = vadd.f32 %v1525, %v1616
        %v1618 = vpop.f32.mrb[0].mxu0
        %v1619 = vadd.f32 %v1527, %v1618
        %1620 = vdwg.mxu0
        %v1621 = vand.u32 %v1428, 4294901760
        %v1622 = vsub.f32 %v1428, %v1621
        %1623 = vmatprep.subr.mxu0 %v1622
        %v1624 = vand.u32 %v1427, 4294901760
        %v1625 = vsub.f32 %v1427, %v1624
        %1626 = vmatpush1.msra.mxu0 %v1625
        %v1627 = vand.u32 %v1432, 4294901760
        %v1628 = vsub.f32 %v1432, %v1627
        %1629 = vmatprep.subr.mxu0 %v1628
        %v1630 = vand.u32 %v1431, 4294901760
        %v1631 = vsub.f32 %v1431, %v1630
        %1632 = vmatpush1.msra.mxu0 %v1631
        %1633 = vmatprep.subr.mxu0 0.0
        %1634 = vmatpush1.msra.mxu0 0.0
        %1635 = vmatprep.subr.mxu0 0.0
        %1636 = vmatpush1.msra.mxu0 0.0
        %1637 = vmatprep.subr.mxu0 0.0
        %1638 = vmatpush1.msra.mxu0 0.0
        %1639 = vmatprep.subr.mxu0 0.0
        %1640 = vmatpush1.msra.mxu0 0.0
        %1641 = vmatprep.subr.mxu0 0.0
        %1642 = vmatpush1.msra.mxu0 0.0
        %1643 = vmatprep.subr.mxu0 0.0
        %1644 = vmatpush1.msra.mxu0 0.0
        %1645 = vmatprep.subr.mxu0 0.0
        %1646 = vmatpush1.msra.mxu0 0.0
        %1647 = vmatprep.subr.mxu0 0.0
        %1648 = vmatpush1.msra.mxu0 0.0
        %1649 = vmatprep.subr.mxu0 0.0
        %1650 = vmatpush1.msra.mxu0 0.0
        %1651 = vmatprep.subr.mxu0 0.0
        %1652 = vmatpush1.msra.mxu0 0.0
        %1653 = vmatprep.subr.mxu0 0.0
        %1654 = vmatpush1.msra.mxu0 0.0
        %1655 = vmatprep.subr.mxu0 0.0
        %1656 = vmatpush1.msra.mxu0 0.0
        %1657 = vmatprep.subr.mxu0 0.0
        %1658 = vmatpush1.msra.mxu0 0.0
        %1659 = vmatprep.subr.mxu0 0.0
        %1660 = vmatpush1.msra.mxu0 0.0
        %1661 = vmatprep.subr.mxu0 0.0
        %1662 = vmatpush1.msra.mxu0 0.0
        %1663 = vmatprep.subr.mxu0 0.0
        %1664 = vmatpush1.msra.mxu0 0.0
        %1665 = vmatprep.subr.mxu0 0.0
        %1666 = vmatpush1.msra.mxu0 0.0
        %1667 = vmatprep.subr.mxu0 0.0
        %1668 = vmatpush1.msra.mxu0 0.0
        %1669 = vmatprep.subr.mxu0 0.0
        %1670 = vmatpush1.msra.mxu0 0.0
        %1671 = vmatprep.subr.mxu0 0.0
        %1672 = vmatpush1.msra.mxu0 0.0
        %1673 = vmatprep.subr.mxu0 0.0
        %1674 = vmatpush1.msra.mxu0 0.0
        %1675 = vmatprep.subr.mxu0 0.0
        %1676 = vmatpush1.msra.mxu0 0.0
        %1677 = vmatprep.subr.mxu0 0.0
        %1678 = vmatpush1.msra.mxu0 0.0
        %1679 = vmatprep.subr.mxu0 0.0
        %1680 = vmatpush1.msra.mxu0 0.0
        %1681 = vmatprep.subr.mxu0 0.0
        %1682 = vmatpush1.msra.mxu0 0.0
        %1683 = vmatprep.subr.mxu0 0.0
        %1684 = vmatpush1.msra.mxu0 0.0
        %1685 = vmatprep.subr.mxu0 0.0
        %1686 = vmatpush1.msra.mxu0 0.0
        %1687 = vmatprep.subr.mxu0 0.0
        %1688 = vmatpush1.msra.mxu0 0.0
        %1689 = vmatprep.subr.mxu0 0.0
        %1690 = vmatpush1.msra.mxu0 0.0
        %1691 = vmatprep.subr.mxu0 0.0
        %1692 = vmatpush1.msra.mxu0 0.0
        %1693 = vmatprep.mubr.f32.mxu0 0.0
        %v1694 = vand.u32 %v1447, 4294901760
        %v1695 = vsub.f32 %v1447, %v1694
        %1696 = vmatmul.mubr.f32.gmra.mrb[0].mxu0 %v1695
        %v1697 = vpop.f32.mrb[0].mxu0
        %v1698 = vadd.f32 %v1617, %v1697
        %v1699 = vpop.f32.mrb[0].mxu0
        %v1700 = vadd.f32 %v1619, %v1699
        %1701 = vdwg.mxu0
        %v1702 = vand.u32 %v1428, 4294901760
        %1703 = vmatprep.subr.mxu0 %v1702
        %v1704 = vand.u32 %v1427, 4294901760
        %1705 = vmatpush1.msra.mxu0 %v1704
        %v1706 = vand.u32 %v1432, 4294901760
        %1707 = vmatprep.subr.mxu0 %v1706
        %v1708 = vand.u32 %v1431, 4294901760
        %1709 = vmatpush1.msra.mxu0 %v1708
        %1710 = vmatprep.subr.mxu0 0.0
        %1711 = vmatpush1.msra.mxu0 0.0
        %1712 = vmatprep.subr.mxu0 0.0
        %1713 = vmatpush1.msra.mxu0 0.0
        %1714 = vmatprep.subr.mxu0 0.0
        %1715 = vmatpush1.msra.mxu0 0.0
        %1716 = vmatprep.subr.mxu0 0.0
        %1717 = vmatpush1.msra.mxu0 0.0
        %1718 = vmatprep.subr.mxu0 0.0
        %1719 = vmatpush1.msra.mxu0 0.0
        %1720 = vmatprep.subr.mxu0 0.0
        %1721 = vmatpush1.msra.mxu0 0.0
        %1722 = vmatprep.subr.mxu0 0.0
        %1723 = vmatpush1.msra.mxu0 0.0
        %1724 = vmatprep.subr.mxu0 0.0
        %1725 = vmatpush1.msra.mxu0 0.0
        %1726 = vmatprep.subr.mxu0 0.0
        %1727 = vmatpush1.msra.mxu0 0.0
        %1728 = vmatprep.subr.mxu0 0.0
        %1729 = vmatpush1.msra.mxu0 0.0
        %1730 = vmatprep.subr.mxu0 0.0
        %1731 = vmatpush1.msra.mxu0 0.0
        %1732 = vmatprep.subr.mxu0 0.0
        %1733 = vmatpush1.msra.mxu0 0.0
        %1734 = vmatprep.subr.mxu0 0.0
        %1735 = vmatpush1.msra.mxu0 0.0
        %1736 = vmatprep.subr.mxu0 0.0
        %1737 = vmatpush1.msra.mxu0 0.0
        %1738 = vmatprep.subr.mxu0 0.0
        %1739 = vmatpush1.msra.mxu0 0.0
        %1740 = vmatprep.subr.mxu0 0.0
        %1741 = vmatpush1.msra.mxu0 0.0
        %1742 = vmatprep.subr.mxu0 0.0
        %1743 = vmatpush1.msra.mxu0 0.0
        %1744 = vmatprep.subr.mxu0 0.0
        %1745 = vmatpush1.msra.mxu0 0.0
        %1746 = vmatprep.subr.mxu0 0.0
        %1747 = vmatpush1.msra.mxu0 0.0
        %1748 = vmatprep.subr.mxu0 0.0
        %1749 = vmatpush1.msra.mxu0 0.0
        %1750 = vmatprep.subr.mxu0 0.0
        %1751 = vmatpush1.msra.mxu0 0.0
        %1752 = vmatprep.subr.mxu0 0.0
        %1753 = vmatpush1.msra.mxu0 0.0
        %1754 = vmatprep.subr.mxu0 0.0
        %1755 = vmatpush1.msra.mxu0 0.0
        %1756 = vmatprep.subr.mxu0 0.0
        %1757 = vmatpush1.msra.mxu0 0.0
        %1758 = vmatprep.subr.mxu0 0.0
        %1759 = vmatpush1.msra.mxu0 0.0
        %1760 = vmatprep.subr.mxu0 0.0
        %1761 = vmatpush1.msra.mxu0 0.0
        %1762 = vmatprep.subr.mxu0 0.0
        %1763 = vmatpush1.msra.mxu0 0.0
        %1764 = vmatprep.subr.mxu0 0.0
        %1765 = vmatpush1.msra.mxu0 0.0
        %1766 = vmatprep.subr.mxu0 0.0
        %1767 = vmatpush1.msra.mxu0 0.0
        %1768 = vmatprep.subr.mxu0 0.0
        %1769 = vmatpush1.msra.mxu0 0.0
        %1770 = vmatprep.mubr.f32.mxu0 0.0
        %v1771 = vand.u32 %v1447, 4294901760
        %v1772 = vsub.f32 %v1447, %v1771
        %v1773 = vand.u32 %v1772, 4294901760
        %1774 = vmatmul.mubr.f32.gmra.mrb[0].mxu0 %v1773
        %v1775 = vpop.f32.mrb[0].mxu0
        %v1776 = vadd.f32 %v1698, %v1775
        %v1777 = vpop.f32.mrb[0].mxu0
        %v1778 = vadd.f32 %v1700, %v1777
        %1779 = vdwg.mxu0
        %v1780 = vand.u32 %v1428, 4294901760
        %v1781 = vsub.f32 %v1428, %v1780
        %v1782 = vand.u32 %v1781, 4294901760
        %1783 = vmatprep.subr.mxu0 %v1782
        %v1784 = vand.u32 %v1427, 4294901760
        %v1785 = vsub.f32 %v1427, %v1784
        %v1786 = vand.u32 %v1785, 4294901760
        %1787 = vmatpush1.msra.mxu0 %v1786
        %v1788 = vand.u32 %v1432, 4294901760
        %v1789 = vsub.f32 %v1432, %v1788
        %v1790 = vand.u32 %v1789, 4294901760
        %1791 = vmatprep.subr.mxu0 %v1790
        %v1792 = vand.u32 %v1431, 4294901760
        %v1793 = vsub.f32 %v1431, %v1792
        %v1794 = vand.u32 %v1793, 4294901760
        %1795 = vmatpush1.msra.mxu0 %v1794
        %1796 = vmatprep.subr.mxu0 0.0
        %1797 = vmatpush1.msra.mxu0 0.0
        %1798 = vmatprep.subr.mxu0 0.0
        %1799 = vmatpush1.msra.mxu0 0.0
        %1800 = vmatprep.subr.mxu0 0.0
        %1801 = vmatpush1.msra.mxu0 0.0
        %1802 = vmatprep.subr.mxu0 0.0
        %1803 = vmatpush1.msra.mxu0 0.0
        %1804 = vmatprep.subr.mxu0 0.0
        %1805 = vmatpush1.msra.mxu0 0.0
        %1806 = vmatprep.subr.mxu0 0.0
        %1807 = vmatpush1.msra.mxu0 0.0
        %1808 = vmatprep.subr.mxu0 0.0
        %1809 = vmatpush1.msra.mxu0 0.0
        %1810 = vmatprep.subr.mxu0 0.0
        %1811 = vmatpush1.msra.mxu0 0.0
        %1812 = vmatprep.subr.mxu0 0.0
        %1813 = vmatpush1.msra.mxu0 0.0
        %1814 = vmatprep.subr.mxu0 0.0
        %1815 = vmatpush1.msra.mxu0 0.0
        %1816 = vmatprep.subr.mxu0 0.0
        %1817 = vmatpush1.msra.mxu0 0.0
        %1818 = vmatprep.subr.mxu0 0.0
        %1819 = vmatpush1.msra.mxu0 0.0
        %1820 = vmatprep.subr.mxu0 0.0
        %1821 = vmatpush1.msra.mxu0 0.0
        %1822 = vmatprep.subr.mxu0 0.0
        %1823 = vmatpush1.msra.mxu0 0.0
        %1824 = vmatprep.subr.mxu0 0.0
        %1825 = vmatpush1.msra.mxu0 0.0
        %1826 = vmatprep.subr.mxu0 0.0
        %1827 = vmatpush1.msra.mxu0 0.0
        %1828 = vmatprep.subr.mxu0 0.0
        %1829 = vmatpush1.msra.mxu0 0.0
        %1830 = vmatprep.subr.mxu0 0.0
        %1831 = vmatpush1.msra.mxu0 0.0
        %1832 = vmatprep.subr.mxu0 0.0
        %1833 = vmatpush1.msra.mxu0 0.0
        %1834 = vmatprep.subr.mxu0 0.0
        %1835 = vmatpush1.msra.mxu0 0.0
        %1836 = vmatprep.subr.mxu0 0.0
        %1837 = vmatpush1.msra.mxu0 0.0
        %1838 = vmatprep.subr.mxu0 0.0
        %1839 = vmatpush1.msra.mxu0 0.0
        %1840 = vmatprep.subr.mxu0 0.0
        %1841 = vmatpush1.msra.mxu0 0.0
        %1842 = vmatprep.subr.mxu0 0.0
        %1843 = vmatpush1.msra.mxu0 0.0
        %1844 = vmatprep.subr.mxu0 0.0
        %1845 = vmatpush1.msra.mxu0 0.0
        %1846 = vmatprep.subr.mxu0 0.0
        %1847 = vmatpush1.msra.mxu0 0.0
        %1848 = vmatprep.subr.mxu0 0.0
        %1849 = vmatpush1.msra.mxu0 0.0
        %1850 = vmatprep.subr.mxu0 0.0
        %1851 = vmatpush1.msra.mxu0 0.0
        %1852 = vmatprep.subr.mxu0 0.0
        %1853 = vmatpush1.msra.mxu0 0.0
        %1854 = vmatprep.subr.mxu0 0.0
        %1855 = vmatpush1.msra.mxu0 0.0
        %1856 = vmatprep.mubr.f32.mxu0 0.0
        %v1857 = vand.u32 %v1447, 4294901760
        %1858 = vmatmul.mubr.f32.gmra.mrb[0].mxu0 %v1857
        %v1859 = vpop.f32.mrb[0].mxu0
        %v1860 = vadd.f32 %v1776, %v1859
        %v1861 = vpop.f32.mrb[0].mxu0
        %v1862 = vadd.f32 %v1778, %v1861
        %1863 = vdwg.mxu0
        %v1864 = vand.u32 %v1428, 4294901760
        %1865 = vmatprep.subr.mxu0 %v1864
        %v1866 = vand.u32 %v1427, 4294901760
        %1867 = vmatpush1.msra.mxu0 %v1866
        %v1868 = vand.u32 %v1432, 4294901760
        %1869 = vmatprep.subr.mxu0 %v1868
        %v1870 = vand.u32 %v1431, 4294901760
        %1871 = vmatpush1.msra.mxu0 %v1870
        %1872 = vmatprep.subr.mxu0 0.0
        %1873 = vmatpush1.msra.mxu0 0.0
        %1874 = vmatprep.subr.mxu0 0.0
        %1875 = vmatpush1.msra.mxu0 0.0
        %1876 = vmatprep.subr.mxu0 0.0
        %1877 = vmatpush1.msra.mxu0 0.0
        %1878 = vmatprep.subr.mxu0 0.0
        %1879 = vmatpush1.msra.mxu0 0.0
        %1880 = vmatprep.subr.mxu0 0.0
        %1881 = vmatpush1.msra.mxu0 0.0
        %1882 = vmatprep.subr.mxu0 0.0
        %1883 = vmatpush1.msra.mxu0 0.0
        %1884 = vmatprep.subr.mxu0 0.0
        %1885 = vmatpush1.msra.mxu0 0.0
        %1886 = vmatprep.subr.mxu0 0.0
        %1887 = vmatpush1.msra.mxu0 0.0
        %1888 = vmatprep.subr.mxu0 0.0
        %1889 = vmatpush1.msra.mxu0 0.0
        %1890 = vmatprep.subr.mxu0 0.0
        %1891 = vmatpush1.msra.mxu0 0.0
        %1892 = vmatprep.subr.mxu0 0.0
        %1893 = vmatpush1.msra.mxu0 0.0
        %1894 = vmatprep.subr.mxu0 0.0
        %1895 = vmatpush1.msra.mxu0 0.0
        %1896 = vmatprep.subr.mxu0 0.0
        %1897 = vmatpush1.msra.mxu0 0.0
        %1898 = vmatprep.subr.mxu0 0.0
        %1899 = vmatpush1.msra.mxu0 0.0
        %1900 = vmatprep.subr.mxu0 0.0
        %1901 = vmatpush1.msra.mxu0 0.0
        %1902 = vmatprep.subr.mxu0 0.0
        %1903 = vmatpush1.msra.mxu0 0.0
        %1904 = vmatprep.subr.mxu0 0.0
        %1905 = vmatpush1.msra.mxu0 0.0
        %1906 = vmatprep.subr.mxu0 0.0
        %1907 = vmatpush1.msra.mxu0 0.0
        %1908 = vmatprep.subr.mxu0 0.0
        %1909 = vmatpush1.msra.mxu0 0.0
        %1910 = vmatprep.subr.mxu0 0.0
        %1911 = vmatpush1.msra.mxu0 0.0
        %1912 = vmatprep.subr.mxu0 0.0
        %1913 = vmatpush1.msra.mxu0 0.0
        %1914 = vmatprep.subr.mxu0 0.0
        %1915 = vmatpush1.msra.mxu0 0.0
        %1916 = vmatprep.subr.mxu0 0.0
        %1917 = vmatpush1.msra.mxu0 0.0
        %1918 = vmatprep.subr.mxu0 0.0
        %1919 = vmatpush1.msra.mxu0 0.0
        %1920 = vmatprep.subr.mxu0 0.0
        %1921 = vmatpush1.msra.mxu0 0.0
        %1922 = vmatprep.subr.mxu0 0.0
        %1923 = vmatpush1.msra.mxu0 0.0
        %1924 = vmatprep.subr.mxu0 0.0
        %1925 = vmatpush1.msra.mxu0 0.0
        %1926 = vmatprep.subr.mxu0 0.0
        %1927 = vmatpush1.msra.mxu0 0.0
        %1928 = vmatprep.subr.mxu0 0.0
        %1929 = vmatpush1.msra.mxu0 0.0
        %1930 = vmatprep.subr.mxu0 0.0
        %1931 = vmatpush1.msra.mxu0 0.0
        %1932 = vmatprep.mubr.f32.mxu0 0.0
        %v1933 = vand.u32 %v1447, 4294901760
        %1934 = vmatmul.mubr.f32.gmra.mrb[0].mxu0 %v1933
        %v1935 = vpop.f32.mrb[0].mxu0
        %v1936 = vadd.f32 %v1860, %v1935
        %v1937 = vpop.f32.mrb[0].mxu0
        %v1938 = vadd.f32 %v1862, %v1937
        %1939 = vdwg.mxu0
        %v1940 = vand.u32 %v1430, 4294901760
        %1941 = vmatprep.subr.mxu0 %v1940
        %v1942 = vand.u32 %v1429, 4294901760
        %1943 = vmatpush1.msra.mxu0 %v1942
        %v1944 = vand.u32 %v1434, 4294901760
        %1945 = vmatprep.subr.mxu0 %v1944
        %v1946 = vand.u32 %v1433, 4294901760
        %1947 = vmatpush1.msra.mxu0 %v1946
        %1948 = vmatprep.subr.mxu0 0.0
        %1949 = vmatpush1.msra.mxu0 0.0
        %1950 = vmatprep.subr.mxu0 0.0
        %1951 = vmatpush1.msra.mxu0 0.0
        %1952 = vmatprep.subr.mxu0 0.0
        %1953 = vmatpush1.msra.mxu0 0.0
        %1954 = vmatprep.subr.mxu0 0.0
        %1955 = vmatpush1.msra.mxu0 0.0
        %1956 = vmatprep.subr.mxu0 0.0
        %1957 = vmatpush1.msra.mxu0 0.0
        %1958 = vmatprep.subr.mxu0 0.0
        %1959 = vmatpush1.msra.mxu0 0.0
        %1960 = vmatprep.subr.mxu0 0.0
        %1961 = vmatpush1.msra.mxu0 0.0
        %1962 = vmatprep.subr.mxu0 0.0
        %1963 = vmatpush1.msra.mxu0 0.0
        %1964 = vmatprep.subr.mxu0 0.0
        %1965 = vmatpush1.msra.mxu0 0.0
        %1966 = vmatprep.subr.mxu0 0.0
        %1967 = vmatpush1.msra.mxu0 0.0
        %1968 = vmatprep.subr.mxu0 0.0
        %1969 = vmatpush1.msra.mxu0 0.0
        %1970 = vmatprep.subr.mxu0 0.0
        %1971 = vmatpush1.msra.mxu0 0.0
        %1972 = vmatprep.subr.mxu0 0.0
        %1973 = vmatpush1.msra.mxu0 0.0
        %1974 = vmatprep.subr.mxu0 0.0
        %1975 = vmatpush1.msra.mxu0 0.0
        %1976 = vmatprep.subr.mxu0 0.0
        %1977 = vmatpush1.msra.mxu0 0.0
        %1978 = vmatprep.subr.mxu0 0.0
        %1979 = vmatpush1.msra.mxu0 0.0
        %1980 = vmatprep.subr.mxu0 0.0
        %1981 = vmatpush1.msra.mxu0 0.0
        %1982 = vmatprep.subr.mxu0 0.0
        %1983 = vmatpush1.msra.mxu0 0.0
        %1984 = vmatprep.subr.mxu0 0.0
        %1985 = vmatpush1.msra.mxu0 0.0
        %1986 = vmatprep.subr.mxu0 0.0
        %1987 = vmatpush1.msra.mxu0 0.0
        %1988 = vmatprep.subr.mxu0 0.0
        %1989 = vmatpush1.msra.mxu0 0.0
        %1990 = vmatprep.subr.mxu0 0.0
        %1991 = vmatpush1.msra.mxu0 0.0
        %1992 = vmatprep.subr.mxu0 0.0
        %1993 = vmatpush1.msra.mxu0 0.0
        %1994 = vmatprep.subr.mxu0 0.0
        %1995 = vmatpush1.msra.mxu0 0.0
        %1996 = vmatprep.subr.mxu0 0.0
        %1997 = vmatpush1.msra.mxu0 0.0
        %1998 = vmatprep.subr.mxu0 0.0
        %1999 = vmatpush1.msra.mxu0 0.0
        %2000 = vmatprep.subr.mxu0 0.0
        %2001 = vmatpush1.msra.mxu0 0.0
        %2002 = vmatprep.subr.mxu0 0.0
        %2003 = vmatpush1.msra.mxu0 0.0
        %2004 = vmatprep.subr.mxu0 0.0
        %2005 = vmatpush1.msra.mxu0 0.0
        %2006 = vmatprep.subr.mxu0 0.0
        %2007 = vmatpush1.msra.mxu0 0.0
        %2008 = vmatprep.mubr.f32.mxu0 0.0
        %v2009 = vand.u32 %v1447, 4294901760
        %v2010 = vsub.f32 %v1447, %v2009
        %v2011 = vand.u32 %v2010, 4294901760
        %v2012 = vsub.f32 %v2010, %v2011
        %v2013 = vand.u32 %v2012, 4294901760
        %2014 = vmatmul.mubr.f32.gmra.mrb[0].mxu0 %v2013
        %v2015 = vpop.f32.mrb[0].mxu0
        %v2016 = vadd.f32 %v1445, %v2015
        %v2017 = vpop.f32.mrb[0].mxu0
        %v2018 = vadd.f32 %v1445, %v2017
        %2019 = vdwg.mxu0
        %v2020 = vand.u32 %v1430, 4294901760
        %v2021 = vsub.f32 %v1430, %v2020
        %v2022 = vand.u32 %v2021, 4294901760
        %v2023 = vsub.f32 %v2021, %v2022
        %v2024 = vand.u32 %v2023, 4294901760
        %2025 = vmatprep.subr.mxu0 %v2024
        %v2026 = vand.u32 %v1429, 4294901760
        %v2027 = vsub.f32 %v1429, %v2026
        %v2028 = vand.u32 %v2027, 4294901760
        %v2029 = vsub.f32 %v2027, %v2028
        %v2030 = vand.u32 %v2029, 4294901760
        %2031 = vmatpush1.msra.mxu0 %v2030
        %v2032 = vand.u32 %v1434, 4294901760
        %v2033 = vsub.f32 %v1434, %v2032
        %v2034 = vand.u32 %v2033, 4294901760
        %v2035 = vsub.f32 %v2033, %v2034
        %v2036 = vand.u32 %v2035, 4294901760
        %2037 = vmatprep.subr.mxu0 %v2036
        %v2038 = vand.u32 %v1433, 4294901760
        %v2039 = vsub.f32 %v1433, %v2038
        %v2040 = vand.u32 %v2039, 4294901760
        %v2041 = vsub.f32 %v2039, %v2040
        %v2042 = vand.u32 %v2041, 4294901760
        %2043 = vmatpush1.msra.mxu0 %v2042
        %2044 = vmatprep.subr.mxu0 0.0
        %2045 = vmatpush1.msra.mxu0 0.0
        %2046 = vmatprep.subr.mxu0 0.0
        %2047 = vmatpush1.msra.mxu0 0.0
        %2048 = vmatprep.subr.mxu0 0.0
        %2049 = vmatpush1.msra.mxu0 0.0
        %2050 = vmatprep.subr.mxu0 0.0
        %2051 = vmatpush1.msra.mxu0 0.0
        %2052 = vmatprep.subr.mxu0 0.0
        %2053 = vmatpush1.msra.mxu0 0.0
        %2054 = vmatprep.subr.mxu0 0.0
        %2055 = vmatpush1.msra.mxu0 0.0
        %2056 = vmatprep.subr.mxu0 0.0
        %2057 = vmatpush1.msra.mxu0 0.0
        %2058 = vmatprep.subr.mxu0 0.0
        %2059 = vmatpush1.msra.mxu0 0.0
        %2060 = vmatprep.subr.mxu0 0.0
        %2061 = vmatpush1.msra.mxu0 0.0
        %2062 = vmatprep.subr.mxu0 0.0
        %2063 = vmatpush1.msra.mxu0 0.0
        %2064 = vmatprep.subr.mxu0 0.0
        %2065 = vmatpush1.msra.mxu0 0.0
        %2066 = vmatprep.subr.mxu0 0.0
        %2067 = vmatpush1.msra.mxu0 0.0
        %2068 = vmatprep.subr.mxu0 0.0
        %2069 = vmatpush1.msra.mxu0 0.0
        %2070 = vmatprep.subr.mxu0 0.0
        %2071 = vmatpush1.msra.mxu0 0.0
        %2072 = vmatprep.subr.mxu0 0.0
        %2073 = vmatpush1.msra.mxu0 0.0
        %2074 = vmatprep.subr.mxu0 0.0
        %2075 = vmatpush1.msra.mxu0 0.0
        %2076 = vmatprep.subr.mxu0 0.0
        %2077 = vmatpush1.msra.mxu0 0.0
        %2078 = vmatprep.subr.mxu0 0.0
        %2079 = vmatpush1.msra.mxu0 0.0
        %2080 = vmatprep.subr.mxu0 0.0
        %2081 = vmatpush1.msra.mxu0 0.0
        %2082 = vmatprep.subr.mxu0 0.0
        %2083 = vmatpush1.msra.mxu0 0.0
        %2084 = vmatprep.subr.mxu0 0.0
        %2085 = vmatpush1.msra.mxu0 0.0
        %2086 = vmatprep.subr.mxu0 0.0
        %2087 = vmatpush1.msra.mxu0 0.0
        %2088 = vmatprep.subr.mxu0 0.0
        %2089 = vmatpush1.msra.mxu0 0.0
        %2090 = vmatprep.subr.mxu0 0.0
        %2091 = vmatpush1.msra.mxu0 0.0
        %2092 = vmatprep.subr.mxu0 0.0
        %2093 = vmatpush1.msra.mxu0 0.0
        %2094 = vmatprep.subr.mxu0 0.0
        %2095 = vmatpush1.msra.mxu0 0.0
        %2096 = vmatprep.subr.mxu0 0.0
        %2097 = vmatpush1.msra.mxu0 0.0
        %2098 = vmatprep.subr.mxu0 0.0
        %2099 = vmatpush1.msra.mxu0 0.0
        %2100 = vmatprep.subr.mxu0 0.0
        %2101 = vmatpush1.msra.mxu0 0.0
        %2102 = vmatprep.subr.mxu0 0.0
        %2103 = vmatpush1.msra.mxu0 0.0
        %2104 = vmatprep.mubr.f32.mxu0 0.0
        %v2105 = vand.u32 %v1447, 4294901760
        %2106 = vmatmul.mubr.f32.gmra.mrb[0].mxu0 %v2105
        %v2107 = vpop.f32.mrb[0].mxu0
        %v2108 = vadd.f32 %v2016, %v2107
        %v2109 = vpop.f32.mrb[0].mxu0
        %v2110 = vadd.f32 %v2018, %v2109
        %2111 = vdwg.mxu0
        %v2112 = vand.u32 %v1430, 4294901760
        %v2113 = vsub.f32 %v1430, %v2112
        %2114 = vmatprep.subr.mxu0 %v2113
        %v2115 = vand.u32 %v1429, 4294901760
        %v2116 = vsub.f32 %v1429, %v2115
        %2117 = vmatpush1.msra.mxu0 %v2116
        %v2118 = vand.u32 %v1434, 4294901760
        %v2119 = vsub.f32 %v1434, %v2118
        %2120 = vmatprep.subr.mxu0 %v2119
        %v2121 = vand.u32 %v1433, 4294901760
        %v2122 = vsub.f32 %v1433, %v2121
        %2123 = vmatpush1.msra.mxu0 %v2122
        %2124 = vmatprep.subr.mxu0 0.0
        %2125 = vmatpush1.msra.mxu0 0.0
        %2126 = vmatprep.subr.mxu0 0.0
        %2127 = vmatpush1.msra.mxu0 0.0
        %2128 = vmatprep.subr.mxu0 0.0
        %2129 = vmatpush1.msra.mxu0 0.0
        %2130 = vmatprep.subr.mxu0 0.0
        %2131 = vmatpush1.msra.mxu0 0.0
        %2132 = vmatprep.subr.mxu0 0.0
        %2133 = vmatpush1.msra.mxu0 0.0
        %2134 = vmatprep.subr.mxu0 0.0
        %2135 = vmatpush1.msra.mxu0 0.0
        %2136 = vmatprep.subr.mxu0 0.0
        %2137 = vmatpush1.msra.mxu0 0.0
        %2138 = vmatprep.subr.mxu0 0.0
        %2139 = vmatpush1.msra.mxu0 0.0
        %2140 = vmatprep.subr.mxu0 0.0
        %2141 = vmatpush1.msra.mxu0 0.0
        %2142 = vmatprep.subr.mxu0 0.0
        %2143 = vmatpush1.msra.mxu0 0.0
        %2144 = vmatprep.subr.mxu0 0.0
        %2145 = vmatpush1.msra.mxu0 0.0
        %2146 = vmatprep.subr.mxu0 0.0
        %2147 = vmatpush1.msra.mxu0 0.0
        %2148 = vmatprep.subr.mxu0 0.0
        %2149 = vmatpush1.msra.mxu0 0.0
        %2150 = vmatprep.subr.mxu0 0.0
        %2151 = vmatpush1.msra.mxu0 0.0
        %2152 = vmatprep.subr.mxu0 0.0
        %2153 = vmatpush1.msra.mxu0 0.0
        %2154 = vmatprep.subr.mxu0 0.0
        %2155 = vmatpush1.msra.mxu0 0.0
        %2156 = vmatprep.subr.mxu0 0.0
        %2157 = vmatpush1.msra.mxu0 0.0
        %2158 = vmatprep.subr.mxu0 0.0
        %2159 = vmatpush1.msra.mxu0 0.0
        %2160 = vmatprep.subr.mxu0 0.0
        %2161 = vmatpush1.msra.mxu0 0.0
        %2162 = vmatprep.subr.mxu0 0.0
        %2163 = vmatpush1.msra.mxu0 0.0
        %2164 = vmatprep.subr.mxu0 0.0
        %2165 = vmatpush1.msra.mxu0 0.0
        %2166 = vmatprep.subr.mxu0 0.0
        %2167 = vmatpush1.msra.mxu0 0.0
        %2168 = vmatprep.subr.mxu0 0.0
        %2169 = vmatpush1.msra.mxu0 0.0
        %2170 = vmatprep.subr.mxu0 0.0
        %2171 = vmatpush1.msra.mxu0 0.0
        %2172 = vmatprep.subr.mxu0 0.0
        %2173 = vmatpush1.msra.mxu0 0.0
        %2174 = vmatprep.subr.mxu0 0.0
        %2175 = vmatpush1.msra.mxu0 0.0
        %2176 = vmatprep.subr.mxu0 0.0
        %2177 = vmatpush1.msra.mxu0 0.0
        %2178 = vmatprep.subr.mxu0 0.0
        %2179 = vmatpush1.msra.mxu0 0.0
        %2180 = vmatprep.subr.mxu0 0.0
        %2181 = vmatpush1.msra.mxu0 0.0
        %2182 = vmatprep.subr.mxu0 0.0
        %2183 = vmatpush1.msra.mxu0 0.0
        %2184 = vmatprep.mubr.f32.mxu0 0.0
        %v2185 = vand.u32 %v1447, 4294901760
        %v2186 = vsub.f32 %v1447, %v2185
        %2187 = vmatmul.mubr.f32.gmra.mrb[0].mxu0 %v2186
        %v2188 = vpop.f32.mrb[0].mxu0
        %v2189 = vadd.f32 %v2108, %v2188
        %v2190 = vpop.f32.mrb[0].mxu0
        %v2191 = vadd.f32 %v2110, %v2190
        %2192 = vdwg.mxu0
        %v2193 = vand.u32 %v1430, 4294901760
        %2194 = vmatprep.subr.mxu0 %v2193
        %v2195 = vand.u32 %v1429, 4294901760
        %2196 = vmatpush1.msra.mxu0 %v2195
        %v2197 = vand.u32 %v1434, 4294901760
        %2198 = vmatprep.subr.mxu0 %v2197
        %v2199 = vand.u32 %v1433, 4294901760
        %2200 = vmatpush1.msra.mxu0 %v2199
        %2201 = vmatprep.subr.mxu0 0.0
        %2202 = vmatpush1.msra.mxu0 0.0
        %2203 = vmatprep.subr.mxu0 0.0
        %2204 = vmatpush1.msra.mxu0 0.0
        %2205 = vmatprep.subr.mxu0 0.0
        %2206 = vmatpush1.msra.mxu0 0.0
        %2207 = vmatprep.subr.mxu0 0.0
        %2208 = vmatpush1.msra.mxu0 0.0
        %2209 = vmatprep.subr.mxu0 0.0
        %2210 = vmatpush1.msra.mxu0 0.0
        %2211 = vmatprep.subr.mxu0 0.0
        %2212 = vmatpush1.msra.mxu0 0.0
        %2213 = vmatprep.subr.mxu0 0.0
        %2214 = vmatpush1.msra.mxu0 0.0
        %2215 = vmatprep.subr.mxu0 0.0
        %2216 = vmatpush1.msra.mxu0 0.0
        %2217 = vmatprep.subr.mxu0 0.0
        %2218 = vmatpush1.msra.mxu0 0.0
        %2219 = vmatprep.subr.mxu0 0.0
        %2220 = vmatpush1.msra.mxu0 0.0
        %2221 = vmatprep.subr.mxu0 0.0
        %2222 = vmatpush1.msra.mxu0 0.0
        %2223 = vmatprep.subr.mxu0 0.0
        %2224 = vmatpush1.msra.mxu0 0.0
        %2225 = vmatprep.subr.mxu0 0.0
        %2226 = vmatpush1.msra.mxu0 0.0
        %2227 = vmatprep.subr.mxu0 0.0
        %2228 = vmatpush1.msra.mxu0 0.0
        %2229 = vmatprep.subr.mxu0 0.0
        %2230 = vmatpush1.msra.mxu0 0.0
        %2231 = vmatprep.subr.mxu0 0.0
        %2232 = vmatpush1.msra.mxu0 0.0
        %2233 = vmatprep.subr.mxu0 0.0
        %2234 = vmatpush1.msra.mxu0 0.0
        %2235 = vmatprep.subr.mxu0 0.0
        %2236 = vmatpush1.msra.mxu0 0.0
        %2237 = vmatprep.subr.mxu0 0.0
        %2238 = vmatpush1.msra.mxu0 0.0
        %2239 = vmatprep.subr.mxu0 0.0
        %2240 = vmatpush1.msra.mxu0 0.0
        %2241 = vmatprep.subr.mxu0 0.0
        %2242 = vmatpush1.msra.mxu0 0.0
        %2243 = vmatprep.subr.mxu0 0.0
        %2244 = vmatpush1.msra.mxu0 0.0
        %2245 = vmatprep.subr.mxu0 0.0
        %2246 = vmatpush1.msra.mxu0 0.0
        %2247 = vmatprep.subr.mxu0 0.0
        %2248 = vmatpush1.msra.mxu0 0.0
        %2249 = vmatprep.subr.mxu0 0.0
        %2250 = vmatpush1.msra.mxu0 0.0
        %2251 = vmatprep.subr.mxu0 0.0
        %2252 = vmatpush1.msra.mxu0 0.0
        %2253 = vmatprep.subr.mxu0 0.0
        %2254 = vmatpush1.msra.mxu0 0.0
        %2255 = vmatprep.subr.mxu0 0.0
        %2256 = vmatpush1.msra.mxu0 0.0
        %2257 = vmatprep.subr.mxu0 0.0
        %2258 = vmatpush1.msra.mxu0 0.0
        %2259 = vmatprep.subr.mxu0 0.0
        %2260 = vmatpush1.msra.mxu0 0.0
        %2261 = vmatprep.mubr.f32.mxu0 0.0
        %v2262 = vand.u32 %v1447, 4294901760
        %v2263 = vsub.f32 %v1447, %v2262
        %v2264 = vand.u32 %v2263, 4294901760
        %2265 = vmatmul.mubr.f32.gmra.mrb[0].mxu0 %v2264
        %v2266 = vpop.f32.mrb[0].mxu0
        %v2267 = vadd.f32 %v2189, %v2266
        %v2268 = vpop.f32.mrb[0].mxu0
        %v2269 = vadd.f32 %v2191, %v2268
        %2270 = vdwg.mxu0
        %v2271 = vand.u32 %v1430, 4294901760
        %v2272 = vsub.f32 %v1430, %v2271
        %v2273 = vand.u32 %v2272, 4294901760
        %2274 = vmatprep.subr.mxu0 %v2273
        %v2275 = vand.u32 %v1429, 4294901760
        %v2276 = vsub.f32 %v1429, %v2275
        %v2277 = vand.u32 %v2276, 4294901760
        %2278 = vmatpush1.msra.mxu0 %v2277
        %v2279 = vand.u32 %v1434, 4294901760
        %v2280 = vsub.f32 %v1434, %v2279
        %v2281 = vand.u32 %v2280, 4294901760
        %2282 = vmatprep.subr.mxu0 %v2281
        %v2283 = vand.u32 %v1433, 4294901760
        %v2284 = vsub.f32 %v1433, %v2283
        %v2285 = vand.u32 %v2284, 4294901760
        %2286 = vmatpush1.msra.mxu0 %v2285
        %2287 = vmatprep.subr.mxu0 0.0
        %2288 = vmatpush1.msra.mxu0 0.0
        %2289 = vmatprep.subr.mxu0 0.0
        %2290 = vmatpush1.msra.mxu0 0.0
        %2291 = vmatprep.subr.mxu0 0.0
        %2292 = vmatpush1.msra.mxu0 0.0
        %2293 = vmatprep.subr.mxu0 0.0
        %2294 = vmatpush1.msra.mxu0 0.0
        %2295 = vmatprep.subr.mxu0 0.0
        %2296 = vmatpush1.msra.mxu0 0.0
        %2297 = vmatprep.subr.mxu0 0.0
        %2298 = vmatpush1.msra.mxu0 0.0
        %2299 = vmatprep.subr.mxu0 0.0
        %2300 = vmatpush1.msra.mxu0 0.0
        %2301 = vmatprep.subr.mxu0 0.0
        %2302 = vmatpush1.msra.mxu0 0.0
        %2303 = vmatprep.subr.mxu0 0.0
        %2304 = vmatpush1.msra.mxu0 0.0
        %2305 = vmatprep.subr.mxu0 0.0
        %2306 = vmatpush1.msra.mxu0 0.0
        %2307 = vmatprep.subr.mxu0 0.0
        %2308 = vmatpush1.msra.mxu0 0.0
        %2309 = vmatprep.subr.mxu0 0.0
        %2310 = vmatpush1.msra.mxu0 0.0
        %2311 = vmatprep.subr.mxu0 0.0
        %2312 = vmatpush1.msra.mxu0 0.0
        %2313 = vmatprep.subr.mxu0 0.0
        %2314 = vmatpush1.msra.mxu0 0.0
        %2315 = vmatprep.subr.mxu0 0.0
        %2316 = vmatpush1.msra.mxu0 0.0
        %2317 = vmatprep.subr.mxu0 0.0
        %2318 = vmatpush1.msra.mxu0 0.0
        %2319 = vmatprep.subr.mxu0 0.0
        %2320 = vmatpush1.msra.mxu0 0.0
        %2321 = vmatprep.subr.mxu0 0.0
        %2322 = vmatpush1.msra.mxu0 0.0
        %2323 = vmatprep.subr.mxu0 0.0
        %2324 = vmatpush1.msra.mxu0 0.0
        %2325 = vmatprep.subr.mxu0 0.0
        %2326 = vmatpush1.msra.mxu0 0.0
        %2327 = vmatprep.subr.mxu0 0.0
        %2328 = vmatpush1.msra.mxu0 0.0
        %2329 = vmatprep.subr.mxu0 0.0
        %2330 = vmatpush1.msra.mxu0 0.0
        %2331 = vmatprep.subr.mxu0 0.0
        %2332 = vmatpush1.msra.mxu0 0.0
        %2333 = vmatprep.subr.mxu0 0.0
        %2334 = vmatpush1.msra.mxu0 0.0
        %2335 = vmatprep.subr.mxu0 0.0
        %2336 = vmatpush1.msra.mxu0 0.0
        %2337 = vmatprep.subr.mxu0 0.0
        %2338 = vmatpush1.msra.mxu0 0.0
        %2339 = vmatprep.subr.mxu0 0.0
        %2340 = vmatpush1.msra.mxu0 0.0
        %2341 = vmatprep.subr.mxu0 0.0
        %2342 = vmatpush1.msra.mxu0 0.0
        %2343 = vmatprep.subr.mxu0 0.0
        %2344 = vmatpush1.msra.mxu0 0.0
        %2345 = vmatprep.subr.mxu0 0.0
        %2346 = vmatpush1.msra.mxu0 0.0
        %2347 = vmatprep.mubr.f32.mxu0 0.0
        %v2348 = vand.u32 %v1447, 4294901760
        %2349 = vmatmul.mubr.f32.gmra.mrb[0].mxu0 %v2348
        %v2350 = vpop.f32.mrb[0].mxu0
        %v2351 = vadd.f32 %v2267, %v2350
        %v2352 = vpop.f32.mrb[0].mxu0
        %v2353 = vadd.f32 %v2269, %v2352
        %2354 = vdwg.mxu0
        %v2355 = vand.u32 %v1430, 4294901760
        %2356 = vmatprep.subr.mxu0 %v2355
        %v2357 = vand.u32 %v1429, 4294901760
        %2358 = vmatpush1.msra.mxu0 %v2357
        %v2359 = vand.u32 %v1434, 4294901760
        %2360 = vmatprep.subr.mxu0 %v2359
        %v2361 = vand.u32 %v1433, 4294901760
        %2362 = vmatpush1.msra.mxu0 %v2361
        %2363 = vmatprep.subr.mxu0 0.0
        %2364 = vmatpush1.msra.mxu0 0.0
        %2365 = vmatprep.subr.mxu0 0.0
        %2366 = vmatpush1.msra.mxu0 0.0
        %2367 = vmatprep.subr.mxu0 0.0
        %2368 = vmatpush1.msra.mxu0 0.0
        %2369 = vmatprep.subr.mxu0 0.0
        %2370 = vmatpush1.msra.mxu0 0.0
        %2371 = vmatprep.subr.mxu0 0.0
        %2372 = vmatpush1.msra.mxu0 0.0
        %2373 = vmatprep.subr.mxu0 0.0
        %2374 = vmatpush1.msra.mxu0 0.0
        %2375 = vmatprep.subr.mxu0 0.0
        %2376 = vmatpush1.msra.mxu0 0.0
        %2377 = vmatprep.subr.mxu0 0.0
        %2378 = vmatpush1.msra.mxu0 0.0
        %2379 = vmatprep.subr.mxu0 0.0
        %2380 = vmatpush1.msra.mxu0 0.0
        %2381 = vmatprep.subr.mxu0 0.0
        %2382 = vmatpush1.msra.mxu0 0.0
        %2383 = vmatprep.subr.mxu0 0.0
        %2384 = vmatpush1.msra.mxu0 0.0
        %2385 = vmatprep.subr.mxu0 0.0
        %2386 = vmatpush1.msra.mxu0 0.0
        %2387 = vmatprep.subr.mxu0 0.0
        %2388 = vmatpush1.msra.mxu0 0.0
        %2389 = vmatprep.subr.mxu0 0.0
        %2390 = vmatpush1.msra.mxu0 0.0
        %2391 = vmatprep.subr.mxu0 0.0
        %2392 = vmatpush1.msra.mxu0 0.0
        %2393 = vmatprep.subr.mxu0 0.0
        %2394 = vmatpush1.msra.mxu0 0.0
        %2395 = vmatprep.subr.mxu0 0.0
        %2396 = vmatpush1.msra.mxu0 0.0
        %2397 = vmatprep.subr.mxu0 0.0
        %2398 = vmatpush1.msra.mxu0 0.0
        %2399 = vmatprep.subr.mxu0 0.0
        %2400 = vmatpush1.msra.mxu0 0.0
        %2401 = vmatprep.subr.mxu0 0.0
        %2402 = vmatpush1.msra.mxu0 0.0
        %2403 = vmatprep.subr.mxu0 0.0
        %2404 = vmatpush1.msra.mxu0 0.0
        %2405 = vmatprep.subr.mxu0 0.0
        %2406 = vmatpush1.msra.mxu0 0.0
        %2407 = vmatprep.subr.mxu0 0.0
        %2408 = vmatpush1.msra.mxu0 0.0
        %2409 = vmatprep.subr.mxu0 0.0
        %2410 = vmatpush1.msra.mxu0 0.0
        %2411 = vmatprep.subr.mxu0 0.0
        %2412 = vmatpush1.msra.mxu0 0.0
        %2413 = vmatprep.subr.mxu0 0.0
        %2414 = vmatpush1.msra.mxu0 0.0
        %2415 = vmatprep.subr.mxu0 0.0
        %2416 = vmatpush1.msra.mxu0 0.0
        %2417 = vmatprep.subr.mxu0 0.0
        %2418 = vmatpush1.msra.mxu0 0.0
        %2419 = vmatprep.subr.mxu0 0.0
        %2420 = vmatpush1.msra.mxu0 0.0
        %2421 = vmatprep.subr.mxu0 0.0
        %2422 = vmatpush1.msra.mxu0 0.0
        %2423 = vmatprep.mubr.f32.mxu0 0.0
        %v2424 = vand.u32 %v1447, 4294901760
        %2425 = vmatmul.mubr.f32.gmra.mrb[0].mxu0 %v2424
        %v2426 = vpop.f32.mrb[0].mxu0
        %v2427 = vadd.f32 %v2351, %v2426
        %v2428 = vpop.f32.mrb[0].mxu0
        %v2429 = vadd.f32 %v2353, %v2428
        %2430 = vdwg.mxu0
        %v2435 = vcombine.low %v1936, %v1938
        %v2436 = vcombine.low %v2427, %v2429
        %v2438 = vunpack.c.l.s4 1966171168
        %v2439 = vunpack.c.0.s8 %v2438
        %v2440 = vlaneseq
        %v2441 = vshrl.u32 %v2440, 7
        %v2442 = vsub.s32 %v2439, %v2441
        %v2443 = vrot.slane %v2435, %v2442
        %v2445 = vunpack.c.l.s4 1966171168
        %v2446 = vunpack.c.0.s8 %v2445
        %v2447 = vlaneseq
        %v2448 = vshrl.u32 %v2447, 7
        %v2449 = vsub.s32 %v2446, %v2448
        %v2450 = vrot.slane %v2436, %v2449
        %v2451 = vcombine.low %v2443, %v2450
        %v2453 = vunpack.c.l.s4 1966171168
        %v2454 = vunpack.c.0.s8 %v2453
        %v2455 = vlaneseq
        %v2456 = vshrl.u32 %v2455, 7
        %v2457 = vsub.s32 %v2454, %v2456
        %v2458 = vrot.slane %v2451, %v2457
        %v2460 = vlaneseq
        %vm2461 = vcmp.ge.s32.totalorder %v2460, 0
        %vm2462 = vcmp.lt.s32.totalorder %v2460, 512
        %vm2463 = vmand %vm2461, %vm2462
        %2464 = vst.msk [vmem:[%s245] sm:$0xf] %vm2463, %v2458
        %s2465 = sand.u32 %s161, 1
        %s2466 = scalar_lea.sflag [#allocation4], %s2465
        %s2467 = sand.u32 %s161, 1
        %s2468 = smul.addr %s2467, 4
        %s2469 = scalar_lea.vmem [#allocation3], %s2468
        // Predicated region
        $region45: #{regressor_forward.1} parent=43 // pred_check
          %p2470 = pneg %p171
        $region46: #{regressor_forward.1} parent=43 // pred_check_branch
          %2472 = sbr.rel (%p2470) target = $region48
        $region47: #{regressor_forward.1} parent=43 // pred_region
          %s2473 = smul.u32 4, %s22
          %s2475 = ssub.s32 64, 64
          %2476 = vsyncadd %s2466, %s2475
          %s2477 = smul.addr %s2473, 16
          %s2478 = scalar_lea.hbm %s6, %s2477
          %s2480 = sshll.u32 %s2469, 4
          %s2481 = int_to_ptr.vmem [resolvable:$true] %s2480
          %2483 = dma.vmem_to_hbm [thread:$0]  %s2481, 64, %s2478, %s2466
        $region48: #{regressor_forward.1} parent=43 // pred_fallthru
          _
      $region44: #{regressor_forward.1} parent=5 // pred_fallthru
        _
      %p2484 = scmp.le.s32.totalorder 2, %s17
      // Predicated region
      $region49: #{regressor_forward.1} parent=5 // pred_check
        %p2485 = pneg %p2484
      $region50: #{regressor_forward.1} parent=5 // pred_check_branch
        %2487 = sbr.rel (%p2485) target = $region52
      $region51: #{regressor_forward.1} parent=5 // pred_region
        %s2488 = ssub.s32 %s17, 2
        // Predicated region
        $region53: #{regressor_forward.1} parent=51 // pred_check
          %p2489 = pneg %p177
        $region54: #{regressor_forward.1} parent=51 // pred_check_branch
          %2491 = sbr.rel (%p2489) target = $region56
        $region55: #{regressor_forward.1} parent=51 // pred_region
          %s2492 = sand.u32 %s162, 1
          %s2493 = scalar_lea.sflag [#allocation4], %s2492
          %s2494 = sand.u32 %s162, 1
          %s2495 = smul.addr %s2494, 4
          %s2496 = scalar_lea.vmem [#allocation3], %s2495
          %2497 = dma.done %s2493, 64
        $region56: #{regressor_forward.1} parent=51 // pred_fallthru
          _
      $region52: #{regressor_forward.1} parent=5 // pred_fallthru
        _
    $region6: #{regressor_forward.1} parent=1 // loop_footer
      %s21 = sadd.s32 1, %s17
    $region7: #{regressor_forward.1} parent=1 // loop_footer_branch
      %16 = sbr.rel target = $region3
    $region8: #{regressor_forward.1} parent=1 // loop_exit
      _
    %2498 = vsyncpa [#allocation4], 1
    %s2499 = scalar_lea.sflag [#allocation4], 1
    %2500 = vsyncpa %s2499, 1

</llo_original>
